<compile_context>
chip_gen: v5e
topology: v5e:2x2
jax: 0.10.0
libtpu: 0.0.40
codegen_flags: <defaults>
</compile_context>

<pallas_src>
import jax
import jax.numpy as jnp
from jax.experimental import pallas as pl
from jax.experimental.pallas import tpu as pltpu

HIDDEN = 256


def _round_up(x, m):
    return ((x + m - 1) // m) * m


def _choose_tile(batch):
    """Pick (tile_b, padded_batch).

    Preference order: (1) >=2 grid steps so v7x can shard the 'parallel' batch
    axis across both TensorCores, (2) least padding waste, (3) largest tile
    (amortizes the ~0.35us per-grid-step overhead).
    """
    batch = max(batch, 1)
    best_t, best_key = None, None
    for t in (2048, 1024, 512, 256, 128):
        padded = _round_up(batch, t)
        steps = padded // t
        key = (0 if steps >= 2 else 1, padded - batch, -t)
        if best_key is None or key < best_key:
            best_t, best_key = t, key
    return best_t, _round_up(batch, best_t)


def _critic_kernel(sa_ref,
                   w1_ref, b1_ref,
                   w2_ref, b2_ref, w5_ref, b5_ref,
                   w3_ref, w6_ref, bh_ref,
                   q_ref):
    """Twin-Q forward on one batch tile.

    Layer 1 of both branches is one fused (sa_dim, 2*HIDDEN) matmul.  Layer 2
    stays per-branch (block-diag fusion would double MXU FLOPs).  The N=1
    heads run on the VPU (+ XLU lane-reduce), not the MXU.
    """
    wdt = w1_ref.dtype  # matmul input dtype (f32, or bf16 — recommended)

    # --- fused first layer: h = relu(sa @ [W1|W4] + [b1|b4]) ---
    h = jnp.dot(sa_ref[...].astype(wdt), w1_ref[...],
                preferred_element_type=jnp.float32) + b1_ref[...]
    # One ReLU + cast pass on the full fused hidden, so both branch slices are
    # already in the matmul dtype.
    h = jnp.maximum(h, 0.0).astype(wdt)              # (TILE_B, 2*HIDDEN)

    # --- per-branch second layer (f32 accumulation) ---
    h1 = jnp.maximum(
        jnp.dot(h[:, :HIDDEN], w2_ref[...],
                preferred_element_type=jnp.float32) + b2_ref[...], 0.0)
    h2 = jnp.maximum(
        jnp.dot(h[:, HIDDEN:], w5_ref[...],
                preferred_element_type=jnp.float32) + b5_ref[...], 0.0)

    # --- heads on VPU + XLU (no MXU): q_i = sum(h_i * w_row, -1) + b ---
    q1 = jnp.sum(h1 * w3_ref[...], axis=-1, keepdims=True)   # (TILE_B, 1) f32
    q2 = jnp.sum(h2 * w6_ref[...], axis=-1, keepdims=True)
    q_ref[:, 0:1] = q1 + bh_ref[:, 0:1]
    q_ref[:, 1:2] = q2 + bh_ref[:, 1:2]


def pack_critic_params(params, weight_dtype=jnp.float32):
    """Pack the 12 per-layer params into the fused kernel layout.

    weight_dtype=jnp.bfloat16 is recommended on ALL generations (v5e/v6e/v7x
    MXU peak rates are bf16 rates); accumulation stays f32 in the kernel.
    Biases and the (1, HIDDEN) head rows stay f32 (they live on the VPU path).
    """
    (w1, b1, w2, b2, w3, b3, w4, b4, w5, b5, w6, b6) = params
    wd = weight_dtype
    w1f = jnp.concatenate([w1, w4], axis=1)            # (sa_dim, 2*HIDDEN)
    b1f = jnp.concatenate([b1, b4], axis=1)            # (1, 2*HIDDEN)
    w3row = w3.T                                        # (1, HIDDEN)  VPU head
    w6row = w6.T                                        # (1, HIDDEN)  VPU head
    bh = jnp.concatenate([b3, b6], axis=1)             # (1, 2)
    return (w1f.astype(wd), b1f.astype(jnp.float32),
            w2.astype(wd), b2.astype(jnp.float32),
            w5.astype(wd), b5.astype(jnp.float32),
            w3row.astype(jnp.float32), w6row.astype(jnp.float32),
            bh.astype(jnp.float32))


def critic_forward(state, action, packed_params):
    """JAX wrapper reproducing Critic.forward(state, action) -> (q1, q2)."""
    state = state.astype(jnp.float32)
    action = action.astype(jnp.float32)
    batch = state.shape[0]

    # Wrapper-side concat is a trivial (batch, sa_dim) HLO op; it lets layer-1
    # run as a single K=sa_dim matmul inside the kernel.
    sa = jnp.concatenate([state, action], axis=1)
    sa_dim = sa.shape[1]

    tile_b, padded = _choose_tile(batch)
    if padded != batch:
        sa = jnp.pad(sa, ((0, padded - batch), (0, 0)))

    grid = (padded // tile_b,)

    in_specs = [pl.BlockSpec((tile_b, sa_dim), lambda b: (b, 0))]  # sa tile
    # Weights/biases: whole-array blocks with constant index_map -> stay
    # VMEM-resident across the batch grid (not re-DMA'd per tile).
    in_specs += [pl.BlockSpec(p.shape, lambda b: (0, 0)) for p in packed_params]

    out_specs = pl.BlockSpec((tile_b, 2), lambda b: (b, 0))
    out_shape = jax.ShapeDtypeStruct((padded, 2), jnp.float32)

    # Advisory cost for XLA's scheduler around the custom call.
    flops = 2 * padded * (sa_dim * 2 * HIDDEN + 2 * HIDDEN * HIDDEN + 2 * HIDDEN)
    weight_bytes = sum(int(p.size) * p.dtype.itemsize for p in packed_params)
    bytes_accessed = int(padded * (sa_dim + 2) * 4) + int(weight_bytes)

    q = pl.pallas_call(
        _critic_kernel,
        grid=grid,
        in_specs=in_specs,
        out_specs=out_specs,
        out_shape=out_shape,
        compiler_params=pltpu.CompilerParams(
            dimension_semantics=("parallel",),
            vmem_limit_bytes=32 * 1024 * 1024),
        cost_estimate=pl.CostEstimate(flops=flops, transcendentals=0,
                                      bytes_accessed=bytes_accessed),
    )(sa, *packed_params)

    return q[:batch, 0:1], q[:batch, 1:2]


def init_critic_params(key, state_dim, action_dim):
    """nn.Linear default init: U(-1/sqrt(fan_in), +1/sqrt(fan_in)).

    Weights stored as (in_features, out_features); biases as (1, out_features).
    """
    sa_dim = state_dim + action_dim
    layer_dims = [(sa_dim, HIDDEN), (HIDDEN, HIDDEN), (HIDDEN, 1),
                  (sa_dim, HIDDEN), (HIDDEN, HIDDEN), (HIDDEN, 1)]
    params = []
    keys = jax.random.split(key, 2 * len(layer_dims))
    for i, (fan_in, fan_out) in enumerate(layer_dims):
        bound = 1.0 / jnp.sqrt(jnp.float32(fan_in))
        w = jax.random.uniform(keys[2 * i], (fan_in, fan_out),
                               minval=-bound, maxval=bound, dtype=jnp.float32)
        b = jax.random.uniform(keys[2 * i + 1], (1, fan_out),
                               minval=-bound, maxval=bound, dtype=jnp.float32)
        params.append(w)
        params.append(b)
    return tuple(params)


def _reference_forward(state, action, params):
    """Pure-JAX reference mirroring the PyTorch module."""
    (w1, b1, w2, b2, w3, b3, w4, b4, w5, b5, w6, b6) = params
    sa = jnp.concatenate([state, action], axis=1)
    h = jax.nn.relu(sa @ w1 + b1)
    h = jax.nn.relu(h @ w2 + b2)
    q1 = h @ w3 + b3
    h = jax.nn.relu(sa @ w4 + b4)
    h = jax.nn.relu(h @ w5 + b5)
    q2 = h @ w6 + b6
    return q1, q2


if __name__ == "__main__":
    state_dim, action_dim, batch = 8, 4, 2

    key = jax.random.PRNGKey(0)
    k_state, k_action, k_params = jax.random.split(key, 3)

    state = jax.random.normal(k_state, (batch, state_dim), dtype=jnp.float32)
    action = jax.random.normal(k_action, (batch, action_dim), dtype=jnp.float32)
    params = init_critic_params(k_params, state_dim, action_dim)

    q1_ref, q2_ref = _reference_forward(state, action, params)

    # --- f32 path (matches the PyTorch semantics) ---
    packed_f32 = pack_critic_params(params, weight_dtype=jnp.float32)
    q1, q2 = critic_forward(state, action, packed_f32)
    q1 = jax.block_until_ready(q1)
    q2 = jax.block_until_ready(q2)
    assert q1.shape == (batch, 1) and q2.shape == (batch, 1)
    assert jnp.allclose(q1, q1_ref, atol=1e-4, rtol=1e-4)
    assert jnp.allclose(q2, q2_ref, atol=1e-4, rtol=1e-4)

    # --- bf16-weight path (recommended MXU input dtype on v5e/v6e/v7x) ---
    packed_bf16 = pack_critic_params(params, weight_dtype=jnp.bfloat16)
    q1b, q2b = critic_forward(state, action, packed_bf16)
    q1b = jax.block_until_ready(q1b)
    q2b = jax.block_until_ready(q2b)
    assert q1b.shape == (batch, 1) and q2b.shape == (batch, 1)
    # Tolerance-checked (not just finiteness): bf16 inputs, f32 accumulation.
    assert jnp.allclose(q1b, q1_ref, atol=1e-1, rtol=1e-1)
    assert jnp.allclose(q2b, q2_ref, atol=1e-1, rtol=1e-1)

    print("KERNEL_OK")
</pallas_src>

<mosaic_0001>
module attributes {stable_mosaic.version = 11 : i64} {
  func.func @_critic_kernel(%arg0: i32, %arg1: memref<128x12xf32, #tpu.memory_space<vmem>>, %arg2: memref<12x512xf32, #tpu.memory_space<vmem>>, %arg3: memref<1x512xf32, #tpu.memory_space<vmem>>, %arg4: memref<256x256xf32, #tpu.memory_space<vmem>>, %arg5: memref<1x256xf32, #tpu.memory_space<vmem>>, %arg6: memref<256x256xf32, #tpu.memory_space<vmem>>, %arg7: memref<1x256xf32, #tpu.memory_space<vmem>>, %arg8: memref<1x256xf32, #tpu.memory_space<vmem>>, %arg9: memref<1x256xf32, #tpu.memory_space<vmem>>, %arg10: memref<1x2xf32, #tpu.memory_space<vmem>>, %arg11: memref<128x2xf32, #tpu.memory_space<vmem>>) attributes {dimension_semantics = [#tpu.dimension_semantics<parallel>], iteration_bounds = array<i64: 1>, scalar_prefetch = 0 : i64, scratch_operands = 0 : i64, tpu.core_type = #tpu.core_type<tc>, window_params = [{transform_indices = @transform_0, window_bounds = array<i64: 128, 12>}, {pipeline_mode = #tpu.pipeline_mode<synchronous>, transform_indices = @transform_1, window_bounds = array<i64: 12, 512>}, {pipeline_mode = #tpu.pipeline_mode<synchronous>, transform_indices = @transform_2, window_bounds = array<i64: 1, 512>}, {pipeline_mode = #tpu.pipeline_mode<synchronous>, transform_indices = @transform_3, window_bounds = array<i64: 256, 256>}, {pipeline_mode = #tpu.pipeline_mode<synchronous>, transform_indices = @transform_4, window_bounds = array<i64: 1, 256>}, {pipeline_mode = #tpu.pipeline_mode<synchronous>, transform_indices = @transform_5, window_bounds = array<i64: 256, 256>}, {pipeline_mode = #tpu.pipeline_mode<synchronous>, transform_indices = @transform_6, window_bounds = array<i64: 1, 256>}, {pipeline_mode = #tpu.pipeline_mode<synchronous>, transform_indices = @transform_7, window_bounds = array<i64: 1, 256>}, {pipeline_mode = #tpu.pipeline_mode<synchronous>, transform_indices = @transform_8, window_bounds = array<i64: 1, 256>}, {pipeline_mode = #tpu.pipeline_mode<synchronous>, transform_indices = @transform_9, window_bounds = array<i64: 1, 2>}, {transform_indices = @transform_10, window_bounds = array<i64: 128, 2>}]} {
    %c0 = arith.constant 0 : index
    %c0_0 = arith.constant 0 : index
    %0 = vector.load %arg1[%c0, %c0_0] : memref<128x12xf32, #tpu.memory_space<vmem>>, vector<128x12xf32>
    %c0_1 = arith.constant 0 : index
    %c0_2 = arith.constant 0 : index
    %1 = vector.load %arg2[%c0_1, %c0_2] : memref<12x512xf32, #tpu.memory_space<vmem>>, vector<12x512xf32>
    %cst = arith.constant dense<0.000000e+00> : vector<128x512xf32>
    %2 = tpu.matmul %0, %1, %cst {dimension_numbers = #tpu.dot_dimension_numbers<[1], [0], [0], [1], [0, 0, 1, 1], [], []>} : vector<128x12xf32>, vector<12x512xf32>, vector<128x512xf32> -> vector<128x512xf32>
    %c0_3 = arith.constant 0 : index
    %c0_4 = arith.constant 0 : index
    %3 = vector.load %arg3[%c0_3, %c0_4] : memref<1x512xf32, #tpu.memory_space<vmem>>, vector<1x512xf32>
    %4 = vector.broadcast %3 : vector<1x512xf32> to vector<128x512xf32>
    %5 = arith.addf %2, %4 : vector<128x512xf32>
    %cst_5 = arith.constant 0.000000e+00 : f32
    %6 = vector.broadcast %cst_5 : f32 to vector<128x512xf32>
    %7 = arith.maximumf %5, %6 : vector<128x512xf32>
    %8 = vector.extract_strided_slice %7 {offsets = [0, 0], sizes = [128, 256], strides = [1, 1]} : vector<128x512xf32> to vector<128x256xf32>
    %c0_6 = arith.constant 0 : index
    %c0_7 = arith.constant 0 : index
    %9 = vector.load %arg4[%c0_6, %c0_7] : memref<256x256xf32, #tpu.memory_space<vmem>>, vector<256x256xf32>
    %cst_8 = arith.constant dense<0.000000e+00> : vector<128x256xf32>
    %10 = tpu.matmul %8, %9, %cst_8 {dimension_numbers = #tpu.dot_dimension_numbers<[1], [0], [0], [1], [0, 0, 1, 1], [], []>} : vector<128x256xf32>, vector<256x256xf32>, vector<128x256xf32> -> vector<128x256xf32>
    %c0_9 = arith.constant 0 : index
    %c0_10 = arith.constant 0 : index
    %11 = vector.load %arg5[%c0_9, %c0_10] : memref<1x256xf32, #tpu.memory_space<vmem>>, vector<1x256xf32>
    %12 = vector.broadcast %11 : vector<1x256xf32> to vector<128x256xf32>
    %13 = arith.addf %10, %12 : vector<128x256xf32>
    %cst_11 = arith.constant 0.000000e+00 : f32
    %14 = vector.broadcast %cst_11 : f32 to vector<128x256xf32>
    %15 = arith.maximumf %13, %14 : vector<128x256xf32>
    %16 = vector.extract_strided_slice %7 {offsets = [0, 256], sizes = [128, 256], strides = [1, 1]} : vector<128x512xf32> to vector<128x256xf32>
    %c0_12 = arith.constant 0 : index
    %c0_13 = arith.constant 0 : index
    %17 = vector.load %arg6[%c0_12, %c0_13] : memref<256x256xf32, #tpu.memory_space<vmem>>, vector<256x256xf32>
    %cst_14 = arith.constant dense<0.000000e+00> : vector<128x256xf32>
    %18 = tpu.matmul %16, %17, %cst_14 {dimension_numbers = #tpu.dot_dimension_numbers<[1], [0], [0], [1], [0, 0, 1, 1], [], []>} : vector<128x256xf32>, vector<256x256xf32>, vector<128x256xf32> -> vector<128x256xf32>
    %c0_15 = arith.constant 0 : index
    %c0_16 = arith.constant 0 : index
    %19 = vector.load %arg7[%c0_15, %c0_16] : memref<1x256xf32, #tpu.memory_space<vmem>>, vector<1x256xf32>
    %20 = vector.broadcast %19 : vector<1x256xf32> to vector<128x256xf32>
    %21 = arith.addf %18, %20 : vector<128x256xf32>
    %cst_17 = arith.constant 0.000000e+00 : f32
    %22 = vector.broadcast %cst_17 : f32 to vector<128x256xf32>
    %23 = arith.maximumf %21, %22 : vector<128x256xf32>
    %c0_18 = arith.constant 0 : index
    %c0_19 = arith.constant 0 : index
    %24 = vector.load %arg8[%c0_18, %c0_19] : memref<1x256xf32, #tpu.memory_space<vmem>>, vector<1x256xf32>
    %25 = vector.broadcast %24 : vector<1x256xf32> to vector<128x256xf32>
    %26 = arith.mulf %15, %25 : vector<128x256xf32>
    %cst_20 = arith.constant dense<0.000000e+00> : vector<128xf32>
    %27 = vector.multi_reduction <add>, %26, %cst_20 [1] : vector<128x256xf32> to vector<128xf32>
    %28 = vector.shape_cast %27 : vector<128xf32> to vector<128x1xf32>
    %c0_21 = arith.constant 0 : index
    %c0_22 = arith.constant 0 : index
    %29 = vector.load %arg9[%c0_21, %c0_22] : memref<1x256xf32, #tpu.memory_space<vmem>>, vector<1x256xf32>
    %30 = vector.broadcast %29 : vector<1x256xf32> to vector<128x256xf32>
    %31 = arith.mulf %23, %30 : vector<128x256xf32>
    %cst_23 = arith.constant dense<0.000000e+00> : vector<128xf32>
    %32 = vector.multi_reduction <add>, %31, %cst_23 [1] : vector<128x256xf32> to vector<128xf32>
    %33 = vector.shape_cast %32 : vector<128xf32> to vector<128x1xf32>
    %c0_24 = arith.constant 0 : index
    %c0_25 = arith.constant 0 : index
    %34 = vector.load %arg10[%c0_24, %c0_25] : memref<1x2xf32, #tpu.memory_space<vmem>>, vector<1x1xf32>
    %35 = vector.broadcast %34 : vector<1x1xf32> to vector<128x1xf32>
    %36 = arith.addf %28, %35 : vector<128x1xf32>
    %c0_26 = arith.constant 0 : index
    %c0_27 = arith.constant 0 : index
    %37 = vector.load %arg11[%c0_26, %c0_27] : memref<128x2xf32, #tpu.memory_space<vmem>>, vector<128x1xf32>
    tpu.vector_store %arg11[%c0_26, %c0_27], %36 {strides = array<i32>} : memref<128x2xf32, #tpu.memory_space<vmem>>, vector<128x1xf32>,
    %c0_28 = arith.constant 0 : index
    %c1 = arith.constant 1 : index
    %38 = vector.load %arg10[%c0_28, %c1] : memref<1x2xf32, #tpu.memory_space<vmem>>, vector<1x1xf32>
    %39 = vector.broadcast %38 : vector<1x1xf32> to vector<128x1xf32>
    %40 = arith.addf %33, %39 : vector<128x1xf32>
    %c0_29 = arith.constant 0 : index
    %c1_30 = arith.constant 1 : index
    %41 = vector.load %arg11[%c0_29, %c1_30] : memref<128x2xf32, #tpu.memory_space<vmem>>, vector<128x1xf32>
    tpu.vector_store %arg11[%c0_29, %c1_30], %40 {strides = array<i32>} : memref<128x2xf32, #tpu.memory_space<vmem>>, vector<128x1xf32>,
    return
  }
  func.func @transform_0(%arg0: i32) -> (i32, i32) {
    %c0_i32 = arith.constant 0 : i32
    %c0_i32_0 = arith.constant 0 : i32
    return %arg0, %c0_i32 : i32, i32
  }
  func.func @transform_1(%arg0: i32) -> (i32, i32) {
    %c0_i32 = arith.constant 0 : i32
    %c0_i32_0 = arith.constant 0 : i32
    %c0_i32_1 = arith.constant 0 : i32
    return %c0_i32, %c0_i32_0 : i32, i32
  }
  func.func @transform_2(%arg0: i32) -> (i32, i32) {
    %c0_i32 = arith.constant 0 : i32
    %c0_i32_0 = arith.constant 0 : i32
    %c0_i32_1 = arith.constant 0 : i32
    return %c0_i32, %c0_i32_0 : i32, i32
  }
  func.func @transform_3(%arg0: i32) -> (i32, i32) {
    %c0_i32 = arith.constant 0 : i32
    %c0_i32_0 = arith.constant 0 : i32
    %c0_i32_1 = arith.constant 0 : i32
    return %c0_i32, %c0_i32_0 : i32, i32
  }
  func.func @transform_4(%arg0: i32) -> (i32, i32) {
    %c0_i32 = arith.constant 0 : i32
    %c0_i32_0 = arith.constant 0 : i32
    %c0_i32_1 = arith.constant 0 : i32
    return %c0_i32, %c0_i32_0 : i32, i32
  }
  func.func @transform_5(%arg0: i32) -> (i32, i32) {
    %c0_i32 = arith.constant 0 : i32
    %c0_i32_0 = arith.constant 0 : i32
    %c0_i32_1 = arith.constant 0 : i32
    return %c0_i32, %c0_i32_0 : i32, i32
  }
  func.func @transform_6(%arg0: i32) -> (i32, i32) {
    %c0_i32 = arith.constant 0 : i32
    %c0_i32_0 = arith.constant 0 : i32
    %c0_i32_1 = arith.constant 0 : i32
    return %c0_i32, %c0_i32_0 : i32, i32
  }
  func.func @transform_7(%arg0: i32) -> (i32, i32) {
    %c0_i32 = arith.constant 0 : i32
    %c0_i32_0 = arith.constant 0 : i32
    %c0_i32_1 = arith.constant 0 : i32
    return %c0_i32, %c0_i32_0 : i32, i32
  }
  func.func @transform_8(%arg0: i32) -> (i32, i32) {
    %c0_i32 = arith.constant 0 : i32
    %c0_i32_0 = arith.constant 0 : i32
    %c0_i32_1 = arith.constant 0 : i32
    return %c0_i32, %c0_i32_0 : i32, i32
  }
  func.func @transform_9(%arg0: i32) -> (i32, i32) {
    %c0_i32 = arith.constant 0 : i32
    %c0_i32_0 = arith.constant 0 : i32
    %c0_i32_1 = arith.constant 0 : i32
    return %c0_i32, %c0_i32_0 : i32, i32
  }
  func.func @transform_10(%arg0: i32) -> (i32, i32) {
    %c0_i32 = arith.constant 0 : i32
    %c0_i32_0 = arith.constant 0 : i32
    return %arg0, %c0_i32 : i32, i32
  }
}

</mosaic_0001>

<llo_original>
// kernel: tpu_custom_call.1
$region0: #{tpu_custom_call.1}
  #allocation0 [shape = 'u32[]', space=smem, size = 0x4, offset = 0x4, fixed_abs, tag = 'smem constant byte address 0x4 - core index']
  #allocation1 [shape = 'u32[72,128]{1,0:T(1,128)}', space=vmem, size = 0x9000, scoped, tag = 'internal scratch']
  %s0 = inlined_call_operand.vmem [shape: f32[128,12], index: 0, kind: input, shape index: {}]
  %s1 = inlined_call_operand.vmem [shape: f32[12,512], index: 1, kind: input, shape index: {}]
  %s2 = inlined_call_operand.vmem [shape: f32[1,512], index: 2, kind: input, shape index: {}]
  %s3 = inlined_call_operand.hbm [shape: f32[256,256], index: 3, kind: input, shape index: {}]
  %s4 = inlined_call_operand.vmem [shape: f32[1,256], index: 4, kind: input, shape index: {}]
  %s5 = inlined_call_operand.hbm [shape: f32[256,256], index: 5, kind: input, shape index: {}]
  %s6 = inlined_call_operand.vmem [shape: f32[1,256], index: 6, kind: input, shape index: {}]
  %s7 = inlined_call_operand.vmem [shape: f32[1,256], index: 7, kind: input, shape index: {}]
  %s8 = inlined_call_operand.vmem [shape: f32[1,256], index: 8, kind: input, shape index: {}]
  %s9 = inlined_call_operand.vmem [shape: f32[1,2], index: 9, kind: input, shape index: {}]
  %s10 = inlined_call_operand.vmem [shape: f32[128,2], index: 10, kind: output, shape index: {}]
  %s11 = sld [smem:[#allocation0]]
  $region58: #{tpu_custom_call.1} parent=0
    _
  %s13 = ssub.s32 1, %s11
  %s14 = scalar_select 0, %s13, %s11
  $region1: #{tpu_custom_call.1} parent=0
    #allocation2 [shape = 'u8[262144]{0}', space=vmem, size = 0x40000, scoped, tag = 'input window, operand 3, single buffered']
    #allocation3 [shape = 's32[1]{0}', space=sflag, size = 0x4, scoped, tag = 'scoped memory for tpu_custom_call.1']
    #allocation4 [shape = 'u8[262144]{0}', space=vmem, size = 0x40000, scoped, tag = 'input window, operand 5, single buffered']
    #allocation5 [shape = 's32[1]{0}', space=sflag, size = 0x4, scoped, tag = 'scoped memory for tpu_custom_call.1']
    %15 = vsyncpa [#allocation3], 0
    %16 = vsyncpa [#allocation5], 0
    // Predicated region
    $region2: #{tpu_custom_call.1} parent=1 // pred_check
      _
    $region3: #{tpu_custom_call.1} parent=1 // pred_check_branch
      %18 = sbr.rel (0) target = $region5
    $region4: #{tpu_custom_call.1} parent=1 // pred_region
      _
    $region5: #{tpu_custom_call.1} parent=1 // pred_fallthru
      _
    // Predicated region
    $region6: #{tpu_custom_call.1} parent=1 // pred_check
      _
    $region7: #{tpu_custom_call.1} parent=1 // pred_check_branch
      %20 = sbr.rel (0) target = $region9
    $region8: #{tpu_custom_call.1} parent=1 // pred_region
      _
    $region9: #{tpu_custom_call.1} parent=1 // pred_fallthru
      _
    // Predicated region
    $region10: #{tpu_custom_call.1} parent=1 // pred_check
      _
    $region11: #{tpu_custom_call.1} parent=1 // pred_check_branch
      %22 = sbr.rel (0) target = $region13
    $region12: #{tpu_custom_call.1} parent=1 // pred_region
      _
    $region13: #{tpu_custom_call.1} parent=1 // pred_fallthru
      _
    // Predicated region
    $region14: #{tpu_custom_call.1} parent=1 // pred_check
      _
    $region15: #{tpu_custom_call.1} parent=1 // pred_check_branch
      %24 = sbr.rel (0) target = $region17
    $region16: #{tpu_custom_call.1} parent=1 // pred_region
      %26 = vsyncadd [#allocation3], 0
      %s27 = sshll.u32 %s3, 4
      %s28 = int_to_ptr.hbm [resolvable:$true] %s27
      %s29 = sshll.u32 [#allocation2], 4
      %s30 = int_to_ptr.vmem [resolvable:$true] %s29
      %35 = dma.hbm_to_vmem [thread:$0]  %s28, 8192, %s30, [#allocation3], 256, 256, 16
    $region17: #{tpu_custom_call.1} parent=1 // pred_fallthru
      _
    // Predicated region
    $region18: #{tpu_custom_call.1} parent=1 // pred_check
      _
    $region19: #{tpu_custom_call.1} parent=1 // pred_check_branch
      %37 = sbr.rel (0) target = $region21
    $region20: #{tpu_custom_call.1} parent=1 // pred_region
      _
    $region21: #{tpu_custom_call.1} parent=1 // pred_fallthru
      _
    // Predicated region
    $region22: #{tpu_custom_call.1} parent=1 // pred_check
      _
    $region23: #{tpu_custom_call.1} parent=1 // pred_check_branch
      %39 = sbr.rel (0) target = $region25
    $region24: #{tpu_custom_call.1} parent=1 // pred_region
      %41 = vsyncadd [#allocation5], 0
      %s42 = sshll.u32 %s5, 4
      %s43 = int_to_ptr.hbm [resolvable:$true] %s42
      %s44 = sshll.u32 [#allocation4], 4
      %s45 = int_to_ptr.vmem [resolvable:$true] %s44
      %50 = dma.hbm_to_vmem [thread:$0]  %s43, 8192, %s45, [#allocation5], 256, 256, 16
    $region25: #{tpu_custom_call.1} parent=1 // pred_fallthru
      _
    // Predicated region
    $region26: #{tpu_custom_call.1} parent=1 // pred_check
      _
    $region27: #{tpu_custom_call.1} parent=1 // pred_check_branch
      %52 = sbr.rel (0) target = $region29
    $region28: #{tpu_custom_call.1} parent=1 // pred_region
      _
    $region29: #{tpu_custom_call.1} parent=1 // pred_fallthru
      _
    // Predicated region
    $region30: #{tpu_custom_call.1} parent=1 // pred_check
      _
    $region31: #{tpu_custom_call.1} parent=1 // pred_check_branch
      %54 = sbr.rel (0) target = $region33
    $region32: #{tpu_custom_call.1} parent=1 // pred_region
      _
    $region33: #{tpu_custom_call.1} parent=1 // pred_fallthru
      _
    // Predicated region
    $region34: #{tpu_custom_call.1} parent=1 // pred_check
      _
    $region35: #{tpu_custom_call.1} parent=1 // pred_check_branch
      %56 = sbr.rel (0) target = $region37
    $region36: #{tpu_custom_call.1} parent=1 // pred_region
      _
    $region37: #{tpu_custom_call.1} parent=1 // pred_fallthru
      _
    // Predicated region
    $region38: #{tpu_custom_call.1} parent=1 // pred_check
      _
    $region39: #{tpu_custom_call.1} parent=1 // pred_check_branch
      %58 = sbr.rel (0) target = $region41
    $region40: #{tpu_custom_call.1} parent=1 // pred_region
      _
    $region41: #{tpu_custom_call.1} parent=1 // pred_fallthru
      _
    // Predicated region
    $region42: #{tpu_custom_call.1} parent=1 // pred_check
      _
    $region43: #{tpu_custom_call.1} parent=1 // pred_check_branch
      %60 = sbr.rel (0) target = $region45
    $region44: #{tpu_custom_call.1} parent=1 // pred_region
      %62 = dma.done [#allocation3], 8192
    $region45: #{tpu_custom_call.1} parent=1 // pred_fallthru
      _
    // Predicated region
    $region46: #{tpu_custom_call.1} parent=1 // pred_check
      _
    $region47: #{tpu_custom_call.1} parent=1 // pred_check_branch
      %64 = sbr.rel (0) target = $region49
    $region48: #{tpu_custom_call.1} parent=1 // pred_region
      %66 = dma.done [#allocation5], 8192
    $region49: #{tpu_custom_call.1} parent=1 // pred_fallthru
      _
    %v67 = vld [vmem:[%s0] sm:$0xff]
    %v68 = vld [vmem:[%s0 + $0x8] sm:$0xff]
    %v69 = vld [vmem:[%s0 + $0x10] sm:$0xff]
    %v70 = vld [vmem:[%s0 + $0x18] sm:$0xff]
    %v71 = vld [vmem:[%s0 + $0x20] sm:$0xff]
    %v72 = vld [vmem:[%s0 + $0x28] sm:$0xff]
    %v73 = vld [vmem:[%s0 + $0x30] sm:$0xff]
    %v74 = vld [vmem:[%s0 + $0x38] sm:$0xff]
    %v75 = vld [vmem:[%s0 + $0x40] sm:$0xff]
    %v76 = vld [vmem:[%s0 + $0x48] sm:$0xff]
    %v77 = vld [vmem:[%s0 + $0x50] sm:$0xff]
    %v78 = vld [vmem:[%s0 + $0x58] sm:$0xff]
    %v79 = vld [vmem:[%s0 + $0x60] sm:$0xff]
    %v80 = vld [vmem:[%s0 + $0x68] sm:$0xff]
    %v81 = vld [vmem:[%s0 + $0x70] sm:$0xff]
    %v82 = vld [vmem:[%s0 + $0x78] sm:$0xff]
    %v83 = vld [vmem:[%s1] sm:$0xff]
    %v84 = vld [vmem:[%s1 + $0x8] sm:$0xff]
    %v85 = vld [vmem:[%s1 + $0x10] sm:$0xff]
    %v86 = vld [vmem:[%s1 + $0x18] sm:$0xff]
    %v87 = vld [vmem:[%s1 + $0x20] sm:$0xf]
    %v88 = vld [vmem:[%s1 + $0x28] sm:$0xf]
    %v89 = vld [vmem:[%s1 + $0x30] sm:$0xf]
    %v90 = vld [vmem:[%s1 + $0x38] sm:$0xf]
    %v91 = vld [vmem:[%s2] sm:$0xf]
    %v93 = vperm.slane %v91, 0
    %v94 = vperm.slane %v91, 1
    %v95 = vperm.slane %v91, 2
    %v96 = vperm.slane %v91, 3
    %vm101 = vcmask 97280
    %v103 = vsel %vm101, %v67, 0
    %v106 = vsel %vm101, %v68, 0
    %v109 = vsel %vm101, %v69, 0
    %v112 = vsel %vm101, %v70, 0
    %v115 = vsel %vm101, %v71, 0
    %v118 = vsel %vm101, %v72, 0
    %v121 = vsel %vm101, %v73, 0
    %v124 = vsel %vm101, %v74, 0
    %v127 = vsel %vm101, %v75, 0
    %v130 = vsel %vm101, %v76, 0
    %v133 = vsel %vm101, %v77, 0
    %v136 = vsel %vm101, %v78, 0
    %v139 = vsel %vm101, %v79, 0
    %v142 = vsel %vm101, %v80, 0
    %v145 = vsel %vm101, %v81, 0
    %v148 = vsel %vm101, %v82, 0
    %vm150 = vcmask 1043456
    %v152 = vsel %vm150, %v87, 0
    %v155 = vsel %vm150, %v88, 0
    %v158 = vsel %vm150, %v89, 0
    %v161 = vsel %vm150, %v90, 0
    %163 = vmatpush.msra.mxu0 0.0
    %164 = vmatpush.msra.mxu0 0.0
    %165 = vmatpush.msra.mxu0 0.0
    %166 = vmatpush.msra.mxu0 0.0
    %167 = vmatpush.msra.mxu0 0.0
    %168 = vmatpush.msra.mxu0 0.0
    %169 = vmatpush.msra.mxu0 0.0
    %170 = vmatpush.msra.mxu0 0.0
    %171 = vmatpush.msra.mxu0 0.0
    %172 = vmatpush.msra.mxu0 0.0
    %173 = vmatpush.msra.mxu0 0.0
    %174 = vmatpush.msra.mxu0 0.0
    %175 = vmatpush.msra.mxu0 0.0
    %176 = vmatpush.msra.mxu0 0.0
    %177 = vmatpush.msra.mxu0 %v152
    %178 = vmatpush.msra.mxu0 %v83
    %179 = vmatmul.f32.gmra.mxu0 %v103
    %v180 = vpop.f32.mrf.mxu0
    %v181 = vadd.f32 %v93, %v180
    %182 = vmatmul.f32.gmra.mxu0 %v106
    %v183 = vpop.f32.mrf.mxu0
    %v184 = vadd.f32 %v93, %v183
    %185 = vmatmul.f32.gmra.mxu0 %v109
    %v186 = vpop.f32.mrf.mxu0
    %v187 = vadd.f32 %v93, %v186
    %188 = vmatmul.f32.gmra.mxu0 %v112
    %v189 = vpop.f32.mrf.mxu0
    %v190 = vadd.f32 %v93, %v189
    %191 = vmatmul.f32.gmra.mxu0 %v115
    %v192 = vpop.f32.mrf.mxu0
    %v193 = vadd.f32 %v93, %v192
    %194 = vmatmul.f32.gmra.mxu0 %v118
    %v195 = vpop.f32.mrf.mxu0
    %v196 = vadd.f32 %v93, %v195
    %197 = vmatmul.f32.gmra.mxu0 %v121
    %v198 = vpop.f32.mrf.mxu0
    %v199 = vadd.f32 %v93, %v198
    %200 = vmatmul.f32.gmra.mxu0 %v124
    %v201 = vpop.f32.mrf.mxu0
    %v202 = vadd.f32 %v93, %v201
    %203 = vmatmul.f32.gmra.mxu0 %v127
    %v204 = vpop.f32.mrf.mxu0
    %v205 = vadd.f32 %v93, %v204
    %206 = vmatmul.f32.gmra.mxu0 %v130
    %v207 = vpop.f32.mrf.mxu0
    %v208 = vadd.f32 %v93, %v207
    %209 = vmatmul.f32.gmra.mxu0 %v133
    %v210 = vpop.f32.mrf.mxu0
    %v211 = vadd.f32 %v93, %v210
    %212 = vmatmul.f32.gmra.mxu0 %v136
    %v213 = vpop.f32.mrf.mxu0
    %v214 = vadd.f32 %v93, %v213
    %215 = vmatmul.f32.gmra.mxu0 %v139
    %v216 = vpop.f32.mrf.mxu0
    %v217 = vadd.f32 %v93, %v216
    %218 = vmatmul.f32.gmra.mxu0 %v142
    %v219 = vpop.f32.mrf.mxu0
    %v220 = vadd.f32 %v93, %v219
    %221 = vmatmul.f32.gmra.mxu0 %v145
    %v222 = vpop.f32.mrf.mxu0
    %v223 = vadd.f32 %v93, %v222
    %224 = vmatmul.f32.gmra.mxu0 %v148
    %v225 = vpop.f32.mrf.mxu0
    %v226 = vadd.f32 %v93, %v225
    %227 = vdwg.mxu0
    %228 = vmatpush.msra.mxu0 0.0
    %229 = vmatpush.msra.mxu0 0.0
    %230 = vmatpush.msra.mxu0 0.0
    %231 = vmatpush.msra.mxu0 0.0
    %232 = vmatpush.msra.mxu0 0.0
    %233 = vmatpush.msra.mxu0 0.0
    %234 = vmatpush.msra.mxu0 0.0
    %235 = vmatpush.msra.mxu0 0.0
    %236 = vmatpush.msra.mxu0 0.0
    %237 = vmatpush.msra.mxu0 0.0
    %238 = vmatpush.msra.mxu0 0.0
    %239 = vmatpush.msra.mxu0 0.0
    %240 = vmatpush.msra.mxu0 0.0
    %241 = vmatpush.msra.mxu0 0.0
    %242 = vmatpush.msra.mxu0 %v155
    %243 = vmatpush.msra.mxu0 %v84
    %244 = vmatmul.f32.gmra.mxu0 %v103
    %v245 = vpop.f32.mrf.mxu0
    %v246 = vadd.f32 %v94, %v245
    %247 = vmatmul.f32.gmra.mxu0 %v106
    %v248 = vpop.f32.mrf.mxu0
    %v249 = vadd.f32 %v94, %v248
    %250 = vmatmul.f32.gmra.mxu0 %v109
    %v251 = vpop.f32.mrf.mxu0
    %v252 = vadd.f32 %v94, %v251
    %253 = vmatmul.f32.gmra.mxu0 %v112
    %v254 = vpop.f32.mrf.mxu0
    %v255 = vadd.f32 %v94, %v254
    %256 = vmatmul.f32.gmra.mxu0 %v115
    %v257 = vpop.f32.mrf.mxu0
    %v258 = vadd.f32 %v94, %v257
    %259 = vmatmul.f32.gmra.mxu0 %v118
    %v260 = vpop.f32.mrf.mxu0
    %v261 = vadd.f32 %v94, %v260
    %262 = vmatmul.f32.gmra.mxu0 %v121
    %v263 = vpop.f32.mrf.mxu0
    %v264 = vadd.f32 %v94, %v263
    %265 = vmatmul.f32.gmra.mxu0 %v124
    %v266 = vpop.f32.mrf.mxu0
    %v267 = vadd.f32 %v94, %v266
    %268 = vmatmul.f32.gmra.mxu0 %v127
    %v269 = vpop.f32.mrf.mxu0
    %v270 = vadd.f32 %v94, %v269
    %271 = vmatmul.f32.gmra.mxu0 %v130
    %v272 = vpop.f32.mrf.mxu0
    %v273 = vadd.f32 %v94, %v272
    %274 = vmatmul.f32.gmra.mxu0 %v133
    %v275 = vpop.f32.mrf.mxu0
    %v276 = vadd.f32 %v94, %v275
    %277 = vmatmul.f32.gmra.mxu0 %v136
    %v278 = vpop.f32.mrf.mxu0
    %v279 = vadd.f32 %v94, %v278
    %280 = vmatmul.f32.gmra.mxu0 %v139
    %v281 = vpop.f32.mrf.mxu0
    %v282 = vadd.f32 %v94, %v281
    %283 = vmatmul.f32.gmra.mxu0 %v142
    %v284 = vpop.f32.mrf.mxu0
    %v285 = vadd.f32 %v94, %v284
    %286 = vmatmul.f32.gmra.mxu0 %v145
    %v287 = vpop.f32.mrf.mxu0
    %v288 = vadd.f32 %v94, %v287
    %289 = vmatmul.f32.gmra.mxu0 %v148
    %v290 = vpop.f32.mrf.mxu0
    %v291 = vadd.f32 %v94, %v290
    %292 = vdwg.mxu0
    %293 = vmatpush.msra.mxu0 0.0
    %294 = vmatpush.msra.mxu0 0.0
    %295 = vmatpush.msra.mxu0 0.0
    %296 = vmatpush.msra.mxu0 0.0
    %297 = vmatpush.msra.mxu0 0.0
    %298 = vmatpush.msra.mxu0 0.0
    %299 = vmatpush.msra.mxu0 0.0
    %300 = vmatpush.msra.mxu0 0.0
    %301 = vmatpush.msra.mxu0 0.0
    %302 = vmatpush.msra.mxu0 0.0
    %303 = vmatpush.msra.mxu0 0.0
    %304 = vmatpush.msra.mxu0 0.0
    %305 = vmatpush.msra.mxu0 0.0
    %306 = vmatpush.msra.mxu0 0.0
    %307 = vmatpush.msra.mxu0 %v158
    %308 = vmatpush.msra.mxu0 %v85
    %309 = vmatmul.f32.gmra.mxu0 %v103
    %v310 = vpop.f32.mrf.mxu0
    %v311 = vadd.f32 %v95, %v310
    %312 = vmatmul.f32.gmra.mxu0 %v106
    %v313 = vpop.f32.mrf.mxu0
    %v314 = vadd.f32 %v95, %v313
    %315 = vmatmul.f32.gmra.mxu0 %v109
    %v316 = vpop.f32.mrf.mxu0
    %v317 = vadd.f32 %v95, %v316
    %318 = vmatmul.f32.gmra.mxu0 %v112
    %v319 = vpop.f32.mrf.mxu0
    %v320 = vadd.f32 %v95, %v319
    %321 = vmatmul.f32.gmra.mxu0 %v115
    %v322 = vpop.f32.mrf.mxu0
    %v323 = vadd.f32 %v95, %v322
    %324 = vmatmul.f32.gmra.mxu0 %v118
    %v325 = vpop.f32.mrf.mxu0
    %v326 = vadd.f32 %v95, %v325
    %327 = vmatmul.f32.gmra.mxu0 %v121
    %v328 = vpop.f32.mrf.mxu0
    %v329 = vadd.f32 %v95, %v328
    %330 = vmatmul.f32.gmra.mxu0 %v124
    %v331 = vpop.f32.mrf.mxu0
    %v332 = vadd.f32 %v95, %v331
    %333 = vmatmul.f32.gmra.mxu0 %v127
    %v334 = vpop.f32.mrf.mxu0
    %v335 = vadd.f32 %v95, %v334
    %336 = vmatmul.f32.gmra.mxu0 %v130
    %v337 = vpop.f32.mrf.mxu0
    %v338 = vadd.f32 %v95, %v337
    %339 = vmatmul.f32.gmra.mxu0 %v133
    %v340 = vpop.f32.mrf.mxu0
    %v341 = vadd.f32 %v95, %v340
    %342 = vmatmul.f32.gmra.mxu0 %v136
    %v343 = vpop.f32.mrf.mxu0
    %v344 = vadd.f32 %v95, %v343
    %345 = vmatmul.f32.gmra.mxu0 %v139
    %v346 = vpop.f32.mrf.mxu0
    %v347 = vadd.f32 %v95, %v346
    %348 = vmatmul.f32.gmra.mxu0 %v142
    %v349 = vpop.f32.mrf.mxu0
    %v350 = vadd.f32 %v95, %v349
    %351 = vmatmul.f32.gmra.mxu0 %v145
    %v352 = vpop.f32.mrf.mxu0
    %v353 = vadd.f32 %v95, %v352
    %354 = vmatmul.f32.gmra.mxu0 %v148
    %v355 = vpop.f32.mrf.mxu0
    %v356 = vadd.f32 %v95, %v355
    %357 = vdwg.mxu0
    %358 = vmatpush.msra.mxu0 0.0
    %359 = vmatpush.msra.mxu0 0.0
    %360 = vmatpush.msra.mxu0 0.0
    %361 = vmatpush.msra.mxu0 0.0
    %362 = vmatpush.msra.mxu0 0.0
    %363 = vmatpush.msra.mxu0 0.0
    %364 = vmatpush.msra.mxu0 0.0
    %365 = vmatpush.msra.mxu0 0.0
    %366 = vmatpush.msra.mxu0 0.0
    %367 = vmatpush.msra.mxu0 0.0
    %368 = vmatpush.msra.mxu0 0.0
    %369 = vmatpush.msra.mxu0 0.0
    %370 = vmatpush.msra.mxu0 0.0
    %371 = vmatpush.msra.mxu0 0.0
    %372 = vmatpush.msra.mxu0 %v161
    %373 = vmatpush.msra.mxu0 %v86
    %374 = vmatmul.f32.gmra.mxu0 %v103
    %v375 = vpop.f32.mrf.mxu0
    %v376 = vadd.f32 %v96, %v375
    %377 = vmatmul.f32.gmra.mxu0 %v106
    %v378 = vpop.f32.mrf.mxu0
    %v379 = vadd.f32 %v96, %v378
    %380 = vmatmul.f32.gmra.mxu0 %v109
    %v381 = vpop.f32.mrf.mxu0
    %v382 = vadd.f32 %v96, %v381
    %383 = vmatmul.f32.gmra.mxu0 %v112
    %v384 = vpop.f32.mrf.mxu0
    %v385 = vadd.f32 %v96, %v384
    %386 = vmatmul.f32.gmra.mxu0 %v115
    %v387 = vpop.f32.mrf.mxu0
    %v388 = vadd.f32 %v96, %v387
    %389 = vmatmul.f32.gmra.mxu0 %v118
    %v390 = vpop.f32.mrf.mxu0
    %v391 = vadd.f32 %v96, %v390
    %392 = vmatmul.f32.gmra.mxu0 %v121
    %v393 = vpop.f32.mrf.mxu0
    %v394 = vadd.f32 %v96, %v393
    %395 = vmatmul.f32.gmra.mxu0 %v124
    %v396 = vpop.f32.mrf.mxu0
    %v397 = vadd.f32 %v96, %v396
    %398 = vmatmul.f32.gmra.mxu0 %v127
    %v399 = vpop.f32.mrf.mxu0
    %v400 = vadd.f32 %v96, %v399
    %401 = vmatmul.f32.gmra.mxu0 %v130
    %v402 = vpop.f32.mrf.mxu0
    %v403 = vadd.f32 %v96, %v402
    %404 = vmatmul.f32.gmra.mxu0 %v133
    %v405 = vpop.f32.mrf.mxu0
    %v406 = vadd.f32 %v96, %v405
    %407 = vmatmul.f32.gmra.mxu0 %v136
    %v408 = vpop.f32.mrf.mxu0
    %v409 = vadd.f32 %v96, %v408
    %410 = vmatmul.f32.gmra.mxu0 %v139
    %v411 = vpop.f32.mrf.mxu0
    %v412 = vadd.f32 %v96, %v411
    %413 = vmatmul.f32.gmra.mxu0 %v142
    %v414 = vpop.f32.mrf.mxu0
    %v415 = vadd.f32 %v96, %v414
    %416 = vmatmul.f32.gmra.mxu0 %v145
    %v417 = vpop.f32.mrf.mxu0
    %v418 = vadd.f32 %v96, %v417
    %419 = vmatmul.f32.gmra.mxu0 %v148
    %v420 = vpop.f32.mrf.mxu0
    %v421 = vadd.f32 %v96, %v420
    %422 = vdwg.mxu0
    %v423 = vmax.f32 %v181, 0.0
    %v424 = vmax.f32 %v246, 0.0
    %v425 = vmax.f32 %v311, 0.0
    %v426 = vmax.f32 %v376, 0.0
    %v427 = vmax.f32 %v184, 0.0
    %v428 = vmax.f32 %v249, 0.0
    %v429 = vmax.f32 %v314, 0.0
    %v430 = vmax.f32 %v379, 0.0
    %v431 = vmax.f32 %v187, 0.0
    %v432 = vmax.f32 %v252, 0.0
    %v433 = vmax.f32 %v317, 0.0
    %v434 = vmax.f32 %v382, 0.0
    %v435 = vmax.f32 %v190, 0.0
    %v436 = vmax.f32 %v255, 0.0
    %v437 = vmax.f32 %v320, 0.0
    %v438 = vmax.f32 %v385, 0.0
    %v439 = vmax.f32 %v193, 0.0
    %v440 = vmax.f32 %v258, 0.0
    %v441 = vmax.f32 %v323, 0.0
    %v442 = vmax.f32 %v388, 0.0
    %v443 = vmax.f32 %v196, 0.0
    %v444 = vmax.f32 %v261, 0.0
    %v445 = vmax.f32 %v326, 0.0
    %v446 = vmax.f32 %v391, 0.0
    %v447 = vmax.f32 %v199, 0.0
    %v448 = vmax.f32 %v264, 0.0
    %v449 = vmax.f32 %v329, 0.0
    %v450 = vmax.f32 %v394, 0.0
    %v451 = vmax.f32 %v202, 0.0
    %v452 = vmax.f32 %v267, 0.0
    %v453 = vmax.f32 %v332, 0.0
    %v454 = vmax.f32 %v397, 0.0
    %v455 = vmax.f32 %v205, 0.0
    %v456 = vmax.f32 %v270, 0.0
    %v457 = vmax.f32 %v335, 0.0
    %v458 = vmax.f32 %v400, 0.0
    %v459 = vmax.f32 %v208, 0.0
    %v460 = vmax.f32 %v273, 0.0
    %v461 = vmax.f32 %v338, 0.0
    %v462 = vmax.f32 %v403, 0.0
    %v463 = vmax.f32 %v211, 0.0
    %v464 = vmax.f32 %v276, 0.0
    %v465 = vmax.f32 %v341, 0.0
    %v466 = vmax.f32 %v406, 0.0
    %v467 = vmax.f32 %v214, 0.0
    %v468 = vmax.f32 %v279, 0.0
    %v469 = vmax.f32 %v344, 0.0
    %v470 = vmax.f32 %v409, 0.0
    %v471 = vmax.f32 %v217, 0.0
    %v472 = vmax.f32 %v282, 0.0
    %v473 = vmax.f32 %v347, 0.0
    %v474 = vmax.f32 %v412, 0.0
    %v475 = vmax.f32 %v220, 0.0
    %v476 = vmax.f32 %v285, 0.0
    %v477 = vmax.f32 %v350, 0.0
    %v478 = vmax.f32 %v415, 0.0
    %v479 = vmax.f32 %v223, 0.0
    %v480 = vmax.f32 %v288, 0.0
    %v481 = vmax.f32 %v353, 0.0
    %v482 = vmax.f32 %v418, 0.0
    %v483 = vmax.f32 %v226, 0.0
    %v484 = vmax.f32 %v291, 0.0
    %v485 = vmax.f32 %v356, 0.0
    %v486 = vmax.f32 %v421, 0.0
    %v487 = vld [vmem:[#allocation2] sm:$0xff]
    %v488 = vld [vmem:[#allocation2 + $0x8] sm:$0xff]
    %v489 = vld [vmem:[#allocation2 + $0x10] sm:$0xff]
    %v490 = vld [vmem:[#allocation2 + $0x18] sm:$0xff]
    %v491 = vld [vmem:[#allocation2 + $0x20] sm:$0xff]
    %v492 = vld [vmem:[#allocation2 + $0x28] sm:$0xff]
    %v493 = vld [vmem:[#allocation2 + $0x30] sm:$0xff]
    %v494 = vld [vmem:[#allocation2 + $0x38] sm:$0xff]
    %v495 = vld [vmem:[#allocation2 + $0x40] sm:$0xff]
    %v496 = vld [vmem:[#allocation2 + $0x48] sm:$0xff]
    %v497 = vld [vmem:[#allocation2 + $0x50] sm:$0xff]
    %v498 = vld [vmem:[#allocation2 + $0x58] sm:$0xff]
    %v499 = vld [vmem:[#allocation2 + $0x60] sm:$0xff]
    %v500 = vld [vmem:[#allocation2 + $0x68] sm:$0xff]
    %v501 = vld [vmem:[#allocation2 + $0x70] sm:$0xff]
    %v502 = vld [vmem:[#allocation2 + $0x78] sm:$0xff]
    %v503 = vld [vmem:[#allocation2 + $0x80] sm:$0xff]
    %v504 = vld [vmem:[#allocation2 + $0x88] sm:$0xff]
    %v505 = vld [vmem:[#allocation2 + $0x90] sm:$0xff]
    %v506 = vld [vmem:[#allocation2 + $0x98] sm:$0xff]
    %v507 = vld [vmem:[#allocation2 + $0xa0] sm:$0xff]
    %v508 = vld [vmem:[#allocation2 + $0xa8] sm:$0xff]
    %v509 = vld [vmem:[#allocation2 + $0xb0] sm:$0xff]
    %v510 = vld [vmem:[#allocation2 + $0xb8] sm:$0xff]
    %v511 = vld [vmem:[#allocation2 + $0xc0] sm:$0xff]
    %v512 = vld [vmem:[#allocation2 + $0xc8] sm:$0xff]
    %v513 = vld [vmem:[#allocation2 + $0xd0] sm:$0xff]
    %v514 = vld [vmem:[#allocation2 + $0xd8] sm:$0xff]
    %v515 = vld [vmem:[#allocation2 + $0xe0] sm:$0xff]
    %v516 = vld [vmem:[#allocation2 + $0xe8] sm:$0xff]
    %v517 = vld [vmem:[#allocation2 + $0xf0] sm:$0xff]
    %v518 = vld [vmem:[#allocation2 + $0xf8] sm:$0xff]
    %v519 = vld [vmem:[#allocation2 + $0x100] sm:$0xff]
    %v520 = vld [vmem:[#allocation2 + $0x108] sm:$0xff]
    %v521 = vld [vmem:[#allocation2 + $0x110] sm:$0xff]
    %v522 = vld [vmem:[#allocation2 + $0x118] sm:$0xff]
    %v523 = vld [vmem:[#allocation2 + $0x120] sm:$0xff]
    %v524 = vld [vmem:[#allocation2 + $0x128] sm:$0xff]
    %v525 = vld [vmem:[#allocation2 + $0x130] sm:$0xff]
    %v526 = vld [vmem:[#allocation2 + $0x138] sm:$0xff]
    %v527 = vld [vmem:[#allocation2 + $0x140] sm:$0xff]
    %v528 = vld [vmem:[#allocation2 + $0x148] sm:$0xff]
    %v529 = vld [vmem:[#allocation2 + $0x150] sm:$0xff]
    %v530 = vld [vmem:[#allocation2 + $0x158] sm:$0xff]
    %v531 = vld [vmem:[#allocation2 + $0x160] sm:$0xff]
    %v532 = vld [vmem:[#allocation2 + $0x168] sm:$0xff]
    %v533 = vld [vmem:[#allocation2 + $0x170] sm:$0xff]
    %v534 = vld [vmem:[#allocation2 + $0x178] sm:$0xff]
    %v535 = vld [vmem:[#allocation2 + $0x180] sm:$0xff]
    %v536 = vld [vmem:[#allocation2 + $0x188] sm:$0xff]
    %v537 = vld [vmem:[#allocation2 + $0x190] sm:$0xff]
    %v538 = vld [vmem:[#allocation2 + $0x198] sm:$0xff]
    %v539 = vld [vmem:[#allocation2 + $0x1a0] sm:$0xff]
    %v540 = vld [vmem:[#allocation2 + $0x1a8] sm:$0xff]
    %v541 = vld [vmem:[#allocation2 + $0x1b0] sm:$0xff]
    %v542 = vld [vmem:[#allocation2 + $0x1b8] sm:$0xff]
    %v543 = vld [vmem:[#allocation2 + $0x1c0] sm:$0xff]
    %v544 = vld [vmem:[#allocation2 + $0x1c8] sm:$0xff]
    %v545 = vld [vmem:[#allocation2 + $0x1d0] sm:$0xff]
    %v546 = vld [vmem:[#allocation2 + $0x1d8] sm:$0xff]
    %v547 = vld [vmem:[#allocation2 + $0x1e0] sm:$0xff]
    %v548 = vld [vmem:[#allocation2 + $0x1e8] sm:$0xff]
    %v549 = vld [vmem:[#allocation2 + $0x1f0] sm:$0xff]
    %v550 = vld [vmem:[#allocation2 + $0x1f8] sm:$0xff]
    %v551 = vld [vmem:[%s4] sm:$0x3]
    %v553 = vperm.slane %v551, 0
    %v554 = vperm.slane %v551, 1
    %557 = vmatpush.msra.mxu0 %v517
    %558 = vmatpush.msra.mxu0 %v515
    %559 = vmatpush.msra.mxu0 %v513
    %560 = vmatpush.msra.mxu0 %v511
    %561 = vmatpush.msra.mxu0 %v509
    %562 = vmatpush.msra.mxu0 %v507
    %563 = vmatpush.msra.mxu0 %v505
    %564 = vmatpush.msra.mxu0 %v503
    %565 = vmatpush.msra.mxu0 %v501
    %566 = vmatpush.msra.mxu0 %v499
    %567 = vmatpush.msra.mxu0 %v497
    %568 = vmatpush.msra.mxu0 %v495
    %569 = vmatpush.msra.mxu0 %v493
    %570 = vmatpush.msra.mxu0 %v491
    %571 = vmatpush.msra.mxu0 %v489
    %572 = vmatpush.msra.mxu0 %v487
    %573 = vmatmul.f32.gmra.mxu0 %v423
    %v574 = vpop.f32.mrf.mxu0
    %v575 = vadd.f32 %v553, %v574
    %576 = vmatmul.f32.gmra.mxu0 %v427
    %v577 = vpop.f32.mrf.mxu0
    %v578 = vadd.f32 %v553, %v577
    %579 = vmatmul.f32.gmra.mxu0 %v431
    %v580 = vpop.f32.mrf.mxu0
    %v581 = vadd.f32 %v553, %v580
    %582 = vmatmul.f32.gmra.mxu0 %v435
    %v583 = vpop.f32.mrf.mxu0
    %v584 = vadd.f32 %v553, %v583
    %585 = vmatmul.f32.gmra.mxu0 %v439
    %v586 = vpop.f32.mrf.mxu0
    %v587 = vadd.f32 %v553, %v586
    %588 = vmatmul.f32.gmra.mxu0 %v443
    %v589 = vpop.f32.mrf.mxu0
    %v590 = vadd.f32 %v553, %v589
    %591 = vmatmul.f32.gmra.mxu0 %v447
    %v592 = vpop.f32.mrf.mxu0
    %v593 = vadd.f32 %v553, %v592
    %594 = vmatmul.f32.gmra.mxu0 %v451
    %v595 = vpop.f32.mrf.mxu0
    %v596 = vadd.f32 %v553, %v595
    %597 = vmatmul.f32.gmra.mxu0 %v455
    %v598 = vpop.f32.mrf.mxu0
    %v599 = vadd.f32 %v553, %v598
    %600 = vmatmul.f32.gmra.mxu0 %v459
    %v601 = vpop.f32.mrf.mxu0
    %v602 = vadd.f32 %v553, %v601
    %603 = vmatmul.f32.gmra.mxu0 %v463
    %v604 = vpop.f32.mrf.mxu0
    %v605 = vadd.f32 %v553, %v604
    %606 = vmatmul.f32.gmra.mxu0 %v467
    %v607 = vpop.f32.mrf.mxu0
    %v608 = vadd.f32 %v553, %v607
    %609 = vmatmul.f32.gmra.mxu0 %v471
    %v610 = vpop.f32.mrf.mxu0
    %v611 = vadd.f32 %v553, %v610
    %612 = vmatmul.f32.gmra.mxu0 %v475
    %v613 = vpop.f32.mrf.mxu0
    %v614 = vadd.f32 %v553, %v613
    %615 = vmatmul.f32.gmra.mxu0 %v479
    %v616 = vpop.f32.mrf.mxu0
    %v617 = vadd.f32 %v553, %v616
    %618 = vmatmul.f32.gmra.mxu0 %v483
    %v619 = vpop.f32.mrf.mxu0
    %v620 = vadd.f32 %v553, %v619
    %621 = vdwg.mxu0
    %622 = vmatpush.msra.mxu0 %v549
    %623 = vmatpush.msra.mxu0 %v547
    %624 = vmatpush.msra.mxu0 %v545
    %625 = vmatpush.msra.mxu0 %v543
    %626 = vmatpush.msra.mxu0 %v541
    %627 = vmatpush.msra.mxu0 %v539
    %628 = vmatpush.msra.mxu0 %v537
    %629 = vmatpush.msra.mxu0 %v535
    %630 = vmatpush.msra.mxu0 %v533
    %631 = vmatpush.msra.mxu0 %v531
    %632 = vmatpush.msra.mxu0 %v529
    %633 = vmatpush.msra.mxu0 %v527
    %634 = vmatpush.msra.mxu0 %v525
    %635 = vmatpush.msra.mxu0 %v523
    %636 = vmatpush.msra.mxu0 %v521
    %637 = vmatpush.msra.mxu0 %v519
    %638 = vmatmul.f32.gmra.mxu0 %v424
    %v639 = vpop.f32.mrf.mxu0
    %v640 = vadd.f32 %v575, %v639
    %641 = vmatmul.f32.gmra.mxu0 %v428
    %v642 = vpop.f32.mrf.mxu0
    %v643 = vadd.f32 %v578, %v642
    %644 = vmatmul.f32.gmra.mxu0 %v432
    %v645 = vpop.f32.mrf.mxu0
    %v646 = vadd.f32 %v581, %v645
    %647 = vmatmul.f32.gmra.mxu0 %v436
    %v648 = vpop.f32.mrf.mxu0
    %v649 = vadd.f32 %v584, %v648
    %650 = vmatmul.f32.gmra.mxu0 %v440
    %v651 = vpop.f32.mrf.mxu0
    %v652 = vadd.f32 %v587, %v651
    %653 = vmatmul.f32.gmra.mxu0 %v444
    %v654 = vpop.f32.mrf.mxu0
    %v655 = vadd.f32 %v590, %v654
    %656 = vmatmul.f32.gmra.mxu0 %v448
    %v657 = vpop.f32.mrf.mxu0
    %v658 = vadd.f32 %v593, %v657
    %659 = vmatmul.f32.gmra.mxu0 %v452
    %v660 = vpop.f32.mrf.mxu0
    %v661 = vadd.f32 %v596, %v660
    %662 = vmatmul.f32.gmra.mxu0 %v456
    %v663 = vpop.f32.mrf.mxu0
    %v664 = vadd.f32 %v599, %v663
    %665 = vmatmul.f32.gmra.mxu0 %v460
    %v666 = vpop.f32.mrf.mxu0
    %v667 = vadd.f32 %v602, %v666
    %668 = vmatmul.f32.gmra.mxu0 %v464
    %v669 = vpop.f32.mrf.mxu0
    %v670 = vadd.f32 %v605, %v669
    %671 = vmatmul.f32.gmra.mxu0 %v468
    %v672 = vpop.f32.mrf.mxu0
    %v673 = vadd.f32 %v608, %v672
    %674 = vmatmul.f32.gmra.mxu0 %v472
    %v675 = vpop.f32.mrf.mxu0
    %v676 = vadd.f32 %v611, %v675
    %677 = vmatmul.f32.gmra.mxu0 %v476
    %v678 = vpop.f32.mrf.mxu0
    %v679 = vadd.f32 %v614, %v678
    %680 = vmatmul.f32.gmra.mxu0 %v480
    %v681 = vpop.f32.mrf.mxu0
    %v682 = vadd.f32 %v617, %v681
    %683 = vmatmul.f32.gmra.mxu0 %v484
    %v684 = vpop.f32.mrf.mxu0
    %v685 = vadd.f32 %v620, %v684
    %686 = vdwg.mxu0
    %687 = vmatpush.msra.mxu0 %v518
    %688 = vmatpush.msra.mxu0 %v516
    %689 = vmatpush.msra.mxu0 %v514
    %690 = vmatpush.msra.mxu0 %v512
    %691 = vmatpush.msra.mxu0 %v510
    %692 = vmatpush.msra.mxu0 %v508
    %693 = vmatpush.msra.mxu0 %v506
    %694 = vmatpush.msra.mxu0 %v504
    %695 = vmatpush.msra.mxu0 %v502
    %696 = vmatpush.msra.mxu0 %v500
    %697 = vmatpush.msra.mxu0 %v498
    %698 = vmatpush.msra.mxu0 %v496
    %699 = vmatpush.msra.mxu0 %v494
    %700 = vmatpush.msra.mxu0 %v492
    %701 = vmatpush.msra.mxu0 %v490
    %702 = vmatpush.msra.mxu0 %v488
    %703 = vmatmul.f32.gmra.mxu0 %v423
    %v704 = vpop.f32.mrf.mxu0
    %v705 = vadd.f32 %v554, %v704
    %706 = vmatmul.f32.gmra.mxu0 %v427
    %v707 = vpop.f32.mrf.mxu0
    %v708 = vadd.f32 %v554, %v707
    %709 = vmatmul.f32.gmra.mxu0 %v431
    %v710 = vpop.f32.mrf.mxu0
    %v711 = vadd.f32 %v554, %v710
    %712 = vmatmul.f32.gmra.mxu0 %v435
    %v713 = vpop.f32.mrf.mxu0
    %v714 = vadd.f32 %v554, %v713
    %715 = vmatmul.f32.gmra.mxu0 %v439
    %v716 = vpop.f32.mrf.mxu0
    %v717 = vadd.f32 %v554, %v716
    %718 = vmatmul.f32.gmra.mxu0 %v443
    %v719 = vpop.f32.mrf.mxu0
    %v720 = vadd.f32 %v554, %v719
    %721 = vmatmul.f32.gmra.mxu0 %v447
    %v722 = vpop.f32.mrf.mxu0
    %v723 = vadd.f32 %v554, %v722
    %724 = vmatmul.f32.gmra.mxu0 %v451
    %v725 = vpop.f32.mrf.mxu0
    %v726 = vadd.f32 %v554, %v725
    %727 = vmatmul.f32.gmra.mxu0 %v455
    %v728 = vpop.f32.mrf.mxu0
    %v729 = vadd.f32 %v554, %v728
    %730 = vmatmul.f32.gmra.mxu0 %v459
    %v731 = vpop.f32.mrf.mxu0
    %v732 = vadd.f32 %v554, %v731
    %733 = vmatmul.f32.gmra.mxu0 %v463
    %v734 = vpop.f32.mrf.mxu0
    %v735 = vadd.f32 %v554, %v734
    %736 = vmatmul.f32.gmra.mxu0 %v467
    %v737 = vpop.f32.mrf.mxu0
    %v738 = vadd.f32 %v554, %v737
    %739 = vmatmul.f32.gmra.mxu0 %v471
    %v740 = vpop.f32.mrf.mxu0
    %v741 = vadd.f32 %v554, %v740
    %742 = vmatmul.f32.gmra.mxu0 %v475
    %v743 = vpop.f32.mrf.mxu0
    %v744 = vadd.f32 %v554, %v743
    %745 = vmatmul.f32.gmra.mxu0 %v479
    %v746 = vpop.f32.mrf.mxu0
    %v747 = vadd.f32 %v554, %v746
    %748 = vmatmul.f32.gmra.mxu0 %v483
    %v749 = vpop.f32.mrf.mxu0
    %v750 = vadd.f32 %v554, %v749
    %751 = vdwg.mxu0
    %752 = vmatpush.msra.mxu0 %v550
    %753 = vmatpush.msra.mxu0 %v548
    %754 = vmatpush.msra.mxu0 %v546
    %755 = vmatpush.msra.mxu0 %v544
    %756 = vmatpush.msra.mxu0 %v542
    %757 = vmatpush.msra.mxu0 %v540
    %758 = vmatpush.msra.mxu0 %v538
    %759 = vmatpush.msra.mxu0 %v536
    %760 = vmatpush.msra.mxu0 %v534
    %761 = vmatpush.msra.mxu0 %v532
    %762 = vmatpush.msra.mxu0 %v530
    %763 = vmatpush.msra.mxu0 %v528
    %764 = vmatpush.msra.mxu0 %v526
    %765 = vmatpush.msra.mxu0 %v524
    %766 = vmatpush.msra.mxu0 %v522
    %767 = vmatpush.msra.mxu0 %v520
    %768 = vmatmul.f32.gmra.mxu0 %v424
    %v769 = vpop.f32.mrf.mxu0
    %v770 = vadd.f32 %v705, %v769
    %771 = vmatmul.f32.gmra.mxu0 %v428
    %v772 = vpop.f32.mrf.mxu0
    %v773 = vadd.f32 %v708, %v772
    %774 = vmatmul.f32.gmra.mxu0 %v432
    %v775 = vpop.f32.mrf.mxu0
    %v776 = vadd.f32 %v711, %v775
    %777 = vmatmul.f32.gmra.mxu0 %v436
    %v778 = vpop.f32.mrf.mxu0
    %v779 = vadd.f32 %v714, %v778
    %780 = vmatmul.f32.gmra.mxu0 %v440
    %v781 = vpop.f32.mrf.mxu0
    %v782 = vadd.f32 %v717, %v781
    %783 = vmatmul.f32.gmra.mxu0 %v444
    %v784 = vpop.f32.mrf.mxu0
    %v785 = vadd.f32 %v720, %v784
    %786 = vmatmul.f32.gmra.mxu0 %v448
    %v787 = vpop.f32.mrf.mxu0
    %v788 = vadd.f32 %v723, %v787
    %789 = vmatmul.f32.gmra.mxu0 %v452
    %v790 = vpop.f32.mrf.mxu0
    %v791 = vadd.f32 %v726, %v790
    %792 = vmatmul.f32.gmra.mxu0 %v456
    %v793 = vpop.f32.mrf.mxu0
    %v794 = vadd.f32 %v729, %v793
    %795 = vmatmul.f32.gmra.mxu0 %v460
    %v796 = vpop.f32.mrf.mxu0
    %v797 = vadd.f32 %v732, %v796
    %798 = vmatmul.f32.gmra.mxu0 %v464
    %v799 = vpop.f32.mrf.mxu0
    %v800 = vadd.f32 %v735, %v799
    %801 = vmatmul.f32.gmra.mxu0 %v468
    %v802 = vpop.f32.mrf.mxu0
    %v803 = vadd.f32 %v738, %v802
    %804 = vmatmul.f32.gmra.mxu0 %v472
    %v805 = vpop.f32.mrf.mxu0
    %v806 = vadd.f32 %v741, %v805
    %807 = vmatmul.f32.gmra.mxu0 %v476
    %v808 = vpop.f32.mrf.mxu0
    %v809 = vadd.f32 %v744, %v808
    %810 = vmatmul.f32.gmra.mxu0 %v480
    %v811 = vpop.f32.mrf.mxu0
    %v812 = vadd.f32 %v747, %v811
    %813 = vmatmul.f32.gmra.mxu0 %v484
    %v814 = vpop.f32.mrf.mxu0
    %v815 = vadd.f32 %v750, %v814
    %816 = vdwg.mxu0
    %v817 = vmax.f32 %v640, 0.0
    %v818 = vmax.f32 %v770, 0.0
    %v819 = vmax.f32 %v643, 0.0
    %v820 = vmax.f32 %v773, 0.0
    %v821 = vmax.f32 %v646, 0.0
    %v822 = vmax.f32 %v776, 0.0
    %v823 = vmax.f32 %v649, 0.0
    %v824 = vmax.f32 %v779, 0.0
    %v825 = vmax.f32 %v652, 0.0
    %v826 = vmax.f32 %v782, 0.0
    %v827 = vmax.f32 %v655, 0.0
    %v828 = vmax.f32 %v785, 0.0
    %v829 = vmax.f32 %v658, 0.0
    %v830 = vmax.f32 %v788, 0.0
    %v831 = vmax.f32 %v661, 0.0
    %v832 = vmax.f32 %v791, 0.0
    %v833 = vmax.f32 %v664, 0.0
    %v834 = vmax.f32 %v794, 0.0
    %v835 = vmax.f32 %v667, 0.0
    %v836 = vmax.f32 %v797, 0.0
    %v837 = vmax.f32 %v670, 0.0
    %v838 = vmax.f32 %v800, 0.0
    %v839 = vmax.f32 %v673, 0.0
    %v840 = vmax.f32 %v803, 0.0
    %v841 = vmax.f32 %v676, 0.0
    %v842 = vmax.f32 %v806, 0.0
    %v843 = vmax.f32 %v679, 0.0
    %v844 = vmax.f32 %v809, 0.0
    %v845 = vmax.f32 %v682, 0.0
    %v846 = vmax.f32 %v812, 0.0
    %v847 = vmax.f32 %v685, 0.0
    %v848 = vmax.f32 %v815, 0.0
    %v849 = vld [vmem:[#allocation4] sm:$0xff]
    %v850 = vld [vmem:[#allocation4 + $0x8] sm:$0xff]
    %v851 = vld [vmem:[#allocation4 + $0x10] sm:$0xff]
    %v852 = vld [vmem:[#allocation4 + $0x18] sm:$0xff]
    %v853 = vld [vmem:[#allocation4 + $0x20] sm:$0xff]
    %v854 = vld [vmem:[#allocation4 + $0x28] sm:$0xff]
    %v855 = vld [vmem:[#allocation4 + $0x30] sm:$0xff]
    %v856 = vld [vmem:[#allocation4 + $0x38] sm:$0xff]
    %v857 = vld [vmem:[#allocation4 + $0x40] sm:$0xff]
    %v858 = vld [vmem:[#allocation4 + $0x48] sm:$0xff]
    %v859 = vld [vmem:[#allocation4 + $0x50] sm:$0xff]
    %v860 = vld [vmem:[#allocation4 + $0x58] sm:$0xff]
    %v861 = vld [vmem:[#allocation4 + $0x60] sm:$0xff]
    %v862 = vld [vmem:[#allocation4 + $0x68] sm:$0xff]
    %v863 = vld [vmem:[#allocation4 + $0x70] sm:$0xff]
    %v864 = vld [vmem:[#allocation4 + $0x78] sm:$0xff]
    %v865 = vld [vmem:[#allocation4 + $0x80] sm:$0xff]
    %v866 = vld [vmem:[#allocation4 + $0x88] sm:$0xff]
    %v867 = vld [vmem:[#allocation4 + $0x90] sm:$0xff]
    %v868 = vld [vmem:[#allocation4 + $0x98] sm:$0xff]
    %v869 = vld [vmem:[#allocation4 + $0xa0] sm:$0xff]
    %v870 = vld [vmem:[#allocation4 + $0xa8] sm:$0xff]
    %v871 = vld [vmem:[#allocation4 + $0xb0] sm:$0xff]
    %v872 = vld [vmem:[#allocation4 + $0xb8] sm:$0xff]
    %v873 = vld [vmem:[#allocation4 + $0xc0] sm:$0xff]
    %v874 = vld [vmem:[#allocation4 + $0xc8] sm:$0xff]
    %v875 = vld [vmem:[#allocation4 + $0xd0] sm:$0xff]
    %v876 = vld [vmem:[#allocation4 + $0xd8] sm:$0xff]
    %v877 = vld [vmem:[#allocation4 + $0xe0] sm:$0xff]
    %v878 = vld [vmem:[#allocation4 + $0xe8] sm:$0xff]
    %v879 = vld [vmem:[#allocation4 + $0xf0] sm:$0xff]
    %v880 = vld [vmem:[#allocation4 + $0xf8] sm:$0xff]
    %v881 = vld [vmem:[#allocation4 + $0x100] sm:$0xff]
    %v882 = vld [vmem:[#allocation4 + $0x108] sm:$0xff]
    %v883 = vld [vmem:[#allocation4 + $0x110] sm:$0xff]
    %v884 = vld [vmem:[#allocation4 + $0x118] sm:$0xff]
    %v885 = vld [vmem:[#allocation4 + $0x120] sm:$0xff]
    %v886 = vld [vmem:[#allocation4 + $0x128] sm:$0xff]
    %v887 = vld [vmem:[#allocation4 + $0x130] sm:$0xff]
    %v888 = vld [vmem:[#allocation4 + $0x138] sm:$0xff]
    %v889 = vld [vmem:[#allocation4 + $0x140] sm:$0xff]
    %v890 = vld [vmem:[#allocation4 + $0x148] sm:$0xff]
    %v891 = vld [vmem:[#allocation4 + $0x150] sm:$0xff]
    %v892 = vld [vmem:[#allocation4 + $0x158] sm:$0xff]
    %v893 = vld [vmem:[#allocation4 + $0x160] sm:$0xff]
    %v894 = vld [vmem:[#allocation4 + $0x168] sm:$0xff]
    %v895 = vld [vmem:[#allocation4 + $0x170] sm:$0xff]
    %v896 = vld [vmem:[#allocation4 + $0x178] sm:$0xff]
    %v897 = vld [vmem:[#allocation4 + $0x180] sm:$0xff]
    %v898 = vld [vmem:[#allocation4 + $0x188] sm:$0xff]
    %v899 = vld [vmem:[#allocation4 + $0x190] sm:$0xff]
    %v900 = vld [vmem:[#allocation4 + $0x198] sm:$0xff]
    %v901 = vld [vmem:[#allocation4 + $0x1a0] sm:$0xff]
    %v902 = vld [vmem:[#allocation4 + $0x1a8] sm:$0xff]
    %v903 = vld [vmem:[#allocation4 + $0x1b0] sm:$0xff]
    %v904 = vld [vmem:[#allocation4 + $0x1b8] sm:$0xff]
    %v905 = vld [vmem:[#allocation4 + $0x1c0] sm:$0xff]
    %v906 = vld [vmem:[#allocation4 + $0x1c8] sm:$0xff]
    %v907 = vld [vmem:[#allocation4 + $0x1d0] sm:$0xff]
    %v908 = vld [vmem:[#allocation4 + $0x1d8] sm:$0xff]
    %v909 = vld [vmem:[#allocation4 + $0x1e0] sm:$0xff]
    %v910 = vld [vmem:[#allocation4 + $0x1e8] sm:$0xff]
    %v911 = vld [vmem:[#allocation4 + $0x1f0] sm:$0xff]
    %v912 = vld [vmem:[#allocation4 + $0x1f8] sm:$0xff]
    %v913 = vld [vmem:[%s6] sm:$0x3]
    %v915 = vperm.slane %v913, 0
    %v916 = vperm.slane %v913, 1
    %919 = vmatpush.msra.mxu0 %v879
    %920 = vmatpush.msra.mxu0 %v877
    %921 = vmatpush.msra.mxu0 %v875
    %922 = vmatpush.msra.mxu0 %v873
    %923 = vmatpush.msra.mxu0 %v871
    %924 = vmatpush.msra.mxu0 %v869
    %925 = vmatpush.msra.mxu0 %v867
    %926 = vmatpush.msra.mxu0 %v865
    %927 = vmatpush.msra.mxu0 %v863
    %928 = vmatpush.msra.mxu0 %v861
    %929 = vmatpush.msra.mxu0 %v859
    %930 = vmatpush.msra.mxu0 %v857
    %931 = vmatpush.msra.mxu0 %v855
    %932 = vmatpush.msra.mxu0 %v853
    %933 = vmatpush.msra.mxu0 %v851
    %934 = vmatpush.msra.mxu0 %v849
    %935 = vmatmul.f32.gmra.mxu0 %v425
    %v936 = vpop.f32.mrf.mxu0
    %v937 = vadd.f32 %v915, %v936
    %938 = vmatmul.f32.gmra.mxu0 %v429
    %v939 = vpop.f32.mrf.mxu0
    %v940 = vadd.f32 %v915, %v939
    %941 = vmatmul.f32.gmra.mxu0 %v433
    %v942 = vpop.f32.mrf.mxu0
    %v943 = vadd.f32 %v915, %v942
    %944 = vmatmul.f32.gmra.mxu0 %v437
    %v945 = vpop.f32.mrf.mxu0
    %v946 = vadd.f32 %v915, %v945
    %947 = vmatmul.f32.gmra.mxu0 %v441
    %v948 = vpop.f32.mrf.mxu0
    %v949 = vadd.f32 %v915, %v948
    %950 = vmatmul.f32.gmra.mxu0 %v445
    %v951 = vpop.f32.mrf.mxu0
    %v952 = vadd.f32 %v915, %v951
    %953 = vmatmul.f32.gmra.mxu0 %v449
    %v954 = vpop.f32.mrf.mxu0
    %v955 = vadd.f32 %v915, %v954
    %956 = vmatmul.f32.gmra.mxu0 %v453
    %v957 = vpop.f32.mrf.mxu0
    %v958 = vadd.f32 %v915, %v957
    %959 = vmatmul.f32.gmra.mxu0 %v457
    %v960 = vpop.f32.mrf.mxu0
    %v961 = vadd.f32 %v915, %v960
    %962 = vmatmul.f32.gmra.mxu0 %v461
    %v963 = vpop.f32.mrf.mxu0
    %v964 = vadd.f32 %v915, %v963
    %965 = vmatmul.f32.gmra.mxu0 %v465
    %v966 = vpop.f32.mrf.mxu0
    %v967 = vadd.f32 %v915, %v966
    %968 = vmatmul.f32.gmra.mxu0 %v469
    %v969 = vpop.f32.mrf.mxu0
    %v970 = vadd.f32 %v915, %v969
    %971 = vmatmul.f32.gmra.mxu0 %v473
    %v972 = vpop.f32.mrf.mxu0
    %v973 = vadd.f32 %v915, %v972
    %974 = vmatmul.f32.gmra.mxu0 %v477
    %v975 = vpop.f32.mrf.mxu0
    %v976 = vadd.f32 %v915, %v975
    %977 = vmatmul.f32.gmra.mxu0 %v481
    %v978 = vpop.f32.mrf.mxu0
    %v979 = vadd.f32 %v915, %v978
    %980 = vmatmul.f32.gmra.mxu0 %v485
    %v981 = vpop.f32.mrf.mxu0
    %v982 = vadd.f32 %v915, %v981
    %983 = vdwg.mxu0
    %984 = vmatpush.msra.mxu0 %v911
    %985 = vmatpush.msra.mxu0 %v909
    %986 = vmatpush.msra.mxu0 %v907
    %987 = vmatpush.msra.mxu0 %v905
    %988 = vmatpush.msra.mxu0 %v903
    %989 = vmatpush.msra.mxu0 %v901
    %990 = vmatpush.msra.mxu0 %v899
    %991 = vmatpush.msra.mxu0 %v897
    %992 = vmatpush.msra.mxu0 %v895
    %993 = vmatpush.msra.mxu0 %v893
    %994 = vmatpush.msra.mxu0 %v891
    %995 = vmatpush.msra.mxu0 %v889
    %996 = vmatpush.msra.mxu0 %v887
    %997 = vmatpush.msra.mxu0 %v885
    %998 = vmatpush.msra.mxu0 %v883
    %999 = vmatpush.msra.mxu0 %v881
    %1000 = vmatmul.f32.gmra.mxu0 %v426
    %v1001 = vpop.f32.mrf.mxu0
    %v1002 = vadd.f32 %v937, %v1001
    %1003 = vmatmul.f32.gmra.mxu0 %v430
    %v1004 = vpop.f32.mrf.mxu0
    %v1005 = vadd.f32 %v940, %v1004
    %1006 = vmatmul.f32.gmra.mxu0 %v434
    %v1007 = vpop.f32.mrf.mxu0
    %v1008 = vadd.f32 %v943, %v1007
    %1009 = vmatmul.f32.gmra.mxu0 %v438
    %v1010 = vpop.f32.mrf.mxu0
    %v1011 = vadd.f32 %v946, %v1010
    %1012 = vmatmul.f32.gmra.mxu0 %v442
    %v1013 = vpop.f32.mrf.mxu0
    %v1014 = vadd.f32 %v949, %v1013
    %1015 = vmatmul.f32.gmra.mxu0 %v446
    %v1016 = vpop.f32.mrf.mxu0
    %v1017 = vadd.f32 %v952, %v1016
    %1018 = vmatmul.f32.gmra.mxu0 %v450
    %v1019 = vpop.f32.mrf.mxu0
    %v1020 = vadd.f32 %v955, %v1019
    %1021 = vmatmul.f32.gmra.mxu0 %v454
    %v1022 = vpop.f32.mrf.mxu0
    %v1023 = vadd.f32 %v958, %v1022
    %1024 = vmatmul.f32.gmra.mxu0 %v458
    %v1025 = vpop.f32.mrf.mxu0
    %v1026 = vadd.f32 %v961, %v1025
    %1027 = vmatmul.f32.gmra.mxu0 %v462
    %v1028 = vpop.f32.mrf.mxu0
    %v1029 = vadd.f32 %v964, %v1028
    %1030 = vmatmul.f32.gmra.mxu0 %v466
    %v1031 = vpop.f32.mrf.mxu0
    %v1032 = vadd.f32 %v967, %v1031
    %1033 = vmatmul.f32.gmra.mxu0 %v470
    %v1034 = vpop.f32.mrf.mxu0
    %v1035 = vadd.f32 %v970, %v1034
    %1036 = vmatmul.f32.gmra.mxu0 %v474
    %v1037 = vpop.f32.mrf.mxu0
    %v1038 = vadd.f32 %v973, %v1037
    %1039 = vmatmul.f32.gmra.mxu0 %v478
    %v1040 = vpop.f32.mrf.mxu0
    %v1041 = vadd.f32 %v976, %v1040
    %1042 = vmatmul.f32.gmra.mxu0 %v482
    %v1043 = vpop.f32.mrf.mxu0
    %v1044 = vadd.f32 %v979, %v1043
    %1045 = vmatmul.f32.gmra.mxu0 %v486
    %v1046 = vpop.f32.mrf.mxu0
    %v1047 = vadd.f32 %v982, %v1046
    %1048 = vdwg.mxu0
    %1049 = vmatpush.msra.mxu0 %v880
    %1050 = vmatpush.msra.mxu0 %v878
    %1051 = vmatpush.msra.mxu0 %v876
    %1052 = vmatpush.msra.mxu0 %v874
    %1053 = vmatpush.msra.mxu0 %v872
    %1054 = vmatpush.msra.mxu0 %v870
    %1055 = vmatpush.msra.mxu0 %v868
    %1056 = vmatpush.msra.mxu0 %v866
    %1057 = vmatpush.msra.mxu0 %v864
    %1058 = vmatpush.msra.mxu0 %v862
    %1059 = vmatpush.msra.mxu0 %v860
    %1060 = vmatpush.msra.mxu0 %v858
    %1061 = vmatpush.msra.mxu0 %v856
    %1062 = vmatpush.msra.mxu0 %v854
    %1063 = vmatpush.msra.mxu0 %v852
    %1064 = vmatpush.msra.mxu0 %v850
    %1065 = vmatmul.f32.gmra.mxu0 %v425
    %v1066 = vpop.f32.mrf.mxu0
    %v1067 = vadd.f32 %v916, %v1066
    %1068 = vmatmul.f32.gmra.mxu0 %v429
    %v1069 = vpop.f32.mrf.mxu0
    %v1070 = vadd.f32 %v916, %v1069
    %1071 = vmatmul.f32.gmra.mxu0 %v433
    %v1072 = vpop.f32.mrf.mxu0
    %v1073 = vadd.f32 %v916, %v1072
    %1074 = vmatmul.f32.gmra.mxu0 %v437
    %v1075 = vpop.f32.mrf.mxu0
    %v1076 = vadd.f32 %v916, %v1075
    %1077 = vmatmul.f32.gmra.mxu0 %v441
    %v1078 = vpop.f32.mrf.mxu0
    %v1079 = vadd.f32 %v916, %v1078
    %1080 = vmatmul.f32.gmra.mxu0 %v445
    %v1081 = vpop.f32.mrf.mxu0
    %v1082 = vadd.f32 %v916, %v1081
    %1083 = vmatmul.f32.gmra.mxu0 %v449
    %v1084 = vpop.f32.mrf.mxu0
    %v1085 = vadd.f32 %v916, %v1084
    %1086 = vmatmul.f32.gmra.mxu0 %v453
    %v1087 = vpop.f32.mrf.mxu0
    %v1088 = vadd.f32 %v916, %v1087
    %1089 = vmatmul.f32.gmra.mxu0 %v457
    %v1090 = vpop.f32.mrf.mxu0
    %v1091 = vadd.f32 %v916, %v1090
    %1092 = vmatmul.f32.gmra.mxu0 %v461
    %v1093 = vpop.f32.mrf.mxu0
    %v1094 = vadd.f32 %v916, %v1093
    %1095 = vmatmul.f32.gmra.mxu0 %v465
    %v1096 = vpop.f32.mrf.mxu0
    %v1097 = vadd.f32 %v916, %v1096
    %1098 = vmatmul.f32.gmra.mxu0 %v469
    %v1099 = vpop.f32.mrf.mxu0
    %v1100 = vadd.f32 %v916, %v1099
    %1101 = vmatmul.f32.gmra.mxu0 %v473
    %v1102 = vpop.f32.mrf.mxu0
    %v1103 = vadd.f32 %v916, %v1102
    %1104 = vmatmul.f32.gmra.mxu0 %v477
    %v1105 = vpop.f32.mrf.mxu0
    %v1106 = vadd.f32 %v916, %v1105
    %1107 = vmatmul.f32.gmra.mxu0 %v481
    %v1108 = vpop.f32.mrf.mxu0
    %v1109 = vadd.f32 %v916, %v1108
    %1110 = vmatmul.f32.gmra.mxu0 %v485
    %v1111 = vpop.f32.mrf.mxu0
    %v1112 = vadd.f32 %v916, %v1111
    %1113 = vdwg.mxu0
    %1114 = vmatpush.msra.mxu0 %v912
    %1115 = vmatpush.msra.mxu0 %v910
    %1116 = vmatpush.msra.mxu0 %v908
    %1117 = vmatpush.msra.mxu0 %v906
    %1118 = vmatpush.msra.mxu0 %v904
    %1119 = vmatpush.msra.mxu0 %v902
    %1120 = vmatpush.msra.mxu0 %v900
    %1121 = vmatpush.msra.mxu0 %v898
    %1122 = vmatpush.msra.mxu0 %v896
    %1123 = vmatpush.msra.mxu0 %v894
    %1124 = vmatpush.msra.mxu0 %v892
    %1125 = vmatpush.msra.mxu0 %v890
    %1126 = vmatpush.msra.mxu0 %v888
    %1127 = vmatpush.msra.mxu0 %v886
    %1128 = vmatpush.msra.mxu0 %v884
    %1129 = vmatpush.msra.mxu0 %v882
    %1130 = vmatmul.f32.gmra.mxu0 %v426
    %v1131 = vpop.f32.mrf.mxu0
    %v1132 = vadd.f32 %v1067, %v1131
    %1133 = vmatmul.f32.gmra.mxu0 %v430
    %v1134 = vpop.f32.mrf.mxu0
    %v1135 = vadd.f32 %v1070, %v1134
    %1136 = vmatmul.f32.gmra.mxu0 %v434
    %v1137 = vpop.f32.mrf.mxu0
    %v1138 = vadd.f32 %v1073, %v1137
    %1139 = vmatmul.f32.gmra.mxu0 %v438
    %v1140 = vpop.f32.mrf.mxu0
    %v1141 = vadd.f32 %v1076, %v1140
    %1142 = vmatmul.f32.gmra.mxu0 %v442
    %v1143 = vpop.f32.mrf.mxu0
    %v1144 = vadd.f32 %v1079, %v1143
    %1145 = vmatmul.f32.gmra.mxu0 %v446
    %v1146 = vpop.f32.mrf.mxu0
    %v1147 = vadd.f32 %v1082, %v1146
    %1148 = vmatmul.f32.gmra.mxu0 %v450
    %v1149 = vpop.f32.mrf.mxu0
    %v1150 = vadd.f32 %v1085, %v1149
    %1151 = vmatmul.f32.gmra.mxu0 %v454
    %v1152 = vpop.f32.mrf.mxu0
    %v1153 = vadd.f32 %v1088, %v1152
    %1154 = vmatmul.f32.gmra.mxu0 %v458
    %v1155 = vpop.f32.mrf.mxu0
    %v1156 = vadd.f32 %v1091, %v1155
    %1157 = vmatmul.f32.gmra.mxu0 %v462
    %v1158 = vpop.f32.mrf.mxu0
    %v1159 = vadd.f32 %v1094, %v1158
    %1160 = vmatmul.f32.gmra.mxu0 %v466
    %v1161 = vpop.f32.mrf.mxu0
    %v1162 = vadd.f32 %v1097, %v1161
    %1163 = vmatmul.f32.gmra.mxu0 %v470
    %v1164 = vpop.f32.mrf.mxu0
    %v1165 = vadd.f32 %v1100, %v1164
    %1166 = vmatmul.f32.gmra.mxu0 %v474
    %v1167 = vpop.f32.mrf.mxu0
    %v1168 = vadd.f32 %v1103, %v1167
    %1169 = vmatmul.f32.gmra.mxu0 %v478
    %v1170 = vpop.f32.mrf.mxu0
    %v1171 = vadd.f32 %v1106, %v1170
    %1172 = vmatmul.f32.gmra.mxu0 %v482
    %v1173 = vpop.f32.mrf.mxu0
    %v1174 = vadd.f32 %v1109, %v1173
    %1175 = vmatmul.f32.gmra.mxu0 %v486
    %v1176 = vpop.f32.mrf.mxu0
    %v1177 = vadd.f32 %v1112, %v1176
    %1178 = vdwg.mxu0
    %v1179 = vmax.f32 %v1002, 0.0
    %v1180 = vmax.f32 %v1132, 0.0
    %v1181 = vmax.f32 %v1005, 0.0
    %v1182 = vmax.f32 %v1135, 0.0
    %v1183 = vmax.f32 %v1008, 0.0
    %v1184 = vmax.f32 %v1138, 0.0
    %v1185 = vmax.f32 %v1011, 0.0
    %v1186 = vmax.f32 %v1141, 0.0
    %v1187 = vmax.f32 %v1014, 0.0
    %v1188 = vmax.f32 %v1144, 0.0
    %v1189 = vmax.f32 %v1017, 0.0
    %v1190 = vmax.f32 %v1147, 0.0
    %v1191 = vmax.f32 %v1020, 0.0
    %v1192 = vmax.f32 %v1150, 0.0
    %v1193 = vmax.f32 %v1023, 0.0
    %v1194 = vmax.f32 %v1153, 0.0
    %v1195 = vmax.f32 %v1026, 0.0
    %v1196 = vmax.f32 %v1156, 0.0
    %v1197 = vmax.f32 %v1029, 0.0
    %v1198 = vmax.f32 %v1159, 0.0
    %v1199 = vmax.f32 %v1032, 0.0
    %v1200 = vmax.f32 %v1162, 0.0
    %v1201 = vmax.f32 %v1035, 0.0
    %v1202 = vmax.f32 %v1165, 0.0
    %v1203 = vmax.f32 %v1038, 0.0
    %v1204 = vmax.f32 %v1168, 0.0
    %v1205 = vmax.f32 %v1041, 0.0
    %v1206 = vmax.f32 %v1171, 0.0
    %v1207 = vmax.f32 %v1044, 0.0
    %v1208 = vmax.f32 %v1174, 0.0
    %v1209 = vmax.f32 %v1047, 0.0
    %v1210 = vmax.f32 %v1177, 0.0
    %v1211 = vld [vmem:[%s7] sm:$0x3]
    %v1213 = vperm.slane %v1211, 0
    %v1214 = vperm.slane %v1211, 1
    %v1217 = vmul.f32 %v817, %v1213
    %v1218 = vmul.f32 %v818, %v1214
    %v1219 = vmul.f32 %v819, %v1213
    %v1220 = vmul.f32 %v820, %v1214
    %v1221 = vmul.f32 %v821, %v1213
    %v1222 = vmul.f32 %v822, %v1214
    %v1223 = vmul.f32 %v823, %v1213
    %v1224 = vmul.f32 %v824, %v1214
    %v1225 = vmul.f32 %v825, %v1213
    %v1226 = vmul.f32 %v826, %v1214
    %v1227 = vmul.f32 %v827, %v1213
    %v1228 = vmul.f32 %v828, %v1214
    %v1229 = vmul.f32 %v829, %v1213
    %v1230 = vmul.f32 %v830, %v1214
    %v1231 = vmul.f32 %v831, %v1213
    %v1232 = vmul.f32 %v832, %v1214
    %v1233 = vmul.f32 %v833, %v1213
    %v1234 = vmul.f32 %v834, %v1214
    %v1235 = vmul.f32 %v835, %v1213
    %v1236 = vmul.f32 %v836, %v1214
    %v1237 = vmul.f32 %v837, %v1213
    %v1238 = vmul.f32 %v838, %v1214
    %v1239 = vmul.f32 %v839, %v1213
    %v1240 = vmul.f32 %v840, %v1214
    %v1241 = vmul.f32 %v841, %v1213
    %v1242 = vmul.f32 %v842, %v1214
    %v1243 = vmul.f32 %v843, %v1213
    %v1244 = vmul.f32 %v844, %v1214
    %v1245 = vmul.f32 %v845, %v1213
    %v1246 = vmul.f32 %v846, %v1214
    %v1247 = vmul.f32 %v847, %v1213
    %v1248 = vmul.f32 %v848, %v1214
    %v1249 = vadd.f32 %v1217, %v1218
    %1250 = vadd.xlane.f32.xlu0 %v1249
    %v1251 = vpop.xlane.xlu0 %1250
    %v1252 = vadd.f32 %v1219, %v1220
    %1253 = vadd.xlane.f32.xlu0 %v1252
    %v1254 = vpop.xlane.xlu0 %1253
    %v1255 = vadd.f32 %v1221, %v1222
    %1256 = vadd.xlane.f32.xlu0 %v1255
    %v1257 = vpop.xlane.xlu0 %1256
    %v1258 = vadd.f32 %v1223, %v1224
    %1259 = vadd.xlane.f32.xlu0 %v1258
    %v1260 = vpop.xlane.xlu0 %1259
    %v1261 = vadd.f32 %v1225, %v1226
    %1262 = vadd.xlane.f32.xlu0 %v1261
    %v1263 = vpop.xlane.xlu0 %1262
    %v1264 = vadd.f32 %v1227, %v1228
    %1265 = vadd.xlane.f32.xlu0 %v1264
    %v1266 = vpop.xlane.xlu0 %1265
    %v1267 = vadd.f32 %v1229, %v1230
    %1268 = vadd.xlane.f32.xlu0 %v1267
    %v1269 = vpop.xlane.xlu0 %1268
    %v1270 = vadd.f32 %v1231, %v1232
    %1271 = vadd.xlane.f32.xlu0 %v1270
    %v1272 = vpop.xlane.xlu0 %1271
    %v1273 = vadd.f32 %v1233, %v1234
    %1274 = vadd.xlane.f32.xlu0 %v1273
    %v1275 = vpop.xlane.xlu0 %1274
    %v1276 = vadd.f32 %v1235, %v1236
    %1277 = vadd.xlane.f32.xlu0 %v1276
    %v1278 = vpop.xlane.xlu0 %1277
    %v1279 = vadd.f32 %v1237, %v1238
    %1280 = vadd.xlane.f32.xlu0 %v1279
    %v1281 = vpop.xlane.xlu0 %1280
    %v1282 = vadd.f32 %v1239, %v1240
    %1283 = vadd.xlane.f32.xlu0 %v1282
    %v1284 = vpop.xlane.xlu0 %1283
    %v1285 = vadd.f32 %v1241, %v1242
    %1286 = vadd.xlane.f32.xlu0 %v1285
    %v1287 = vpop.xlane.xlu0 %1286
    %v1288 = vadd.f32 %v1243, %v1244
    %1289 = vadd.xlane.f32.xlu0 %v1288
    %v1290 = vpop.xlane.xlu0 %1289
    %v1291 = vadd.f32 %v1245, %v1246
    %1292 = vadd.xlane.f32.xlu0 %v1291
    %v1293 = vpop.xlane.xlu0 %1292
    %v1294 = vadd.f32 %v1247, %v1248
    %1295 = vadd.xlane.f32.xlu0 %v1294
    %v1296 = vpop.xlane.xlu0 %1295
    %v1297 = vld [vmem:[%s8] sm:$0x3]
    %v1299 = vperm.slane %v1297, 0
    %v1300 = vperm.slane %v1297, 1
    %v1303 = vmul.f32 %v1179, %v1299
    %v1304 = vmul.f32 %v1180, %v1300
    %v1305 = vmul.f32 %v1181, %v1299
    %v1306 = vmul.f32 %v1182, %v1300
    %v1307 = vmul.f32 %v1183, %v1299
    %v1308 = vmul.f32 %v1184, %v1300
    %v1309 = vmul.f32 %v1185, %v1299
    %v1310 = vmul.f32 %v1186, %v1300
    %v1311 = vmul.f32 %v1187, %v1299
    %v1312 = vmul.f32 %v1188, %v1300
    %v1313 = vmul.f32 %v1189, %v1299
    %v1314 = vmul.f32 %v1190, %v1300
    %v1315 = vmul.f32 %v1191, %v1299
    %v1316 = vmul.f32 %v1192, %v1300
    %v1317 = vmul.f32 %v1193, %v1299
    %v1318 = vmul.f32 %v1194, %v1300
    %v1319 = vmul.f32 %v1195, %v1299
    %v1320 = vmul.f32 %v1196, %v1300
    %v1321 = vmul.f32 %v1197, %v1299
    %v1322 = vmul.f32 %v1198, %v1300
    %v1323 = vmul.f32 %v1199, %v1299
    %v1324 = vmul.f32 %v1200, %v1300
    %v1325 = vmul.f32 %v1201, %v1299
    %v1326 = vmul.f32 %v1202, %v1300
    %v1327 = vmul.f32 %v1203, %v1299
    %v1328 = vmul.f32 %v1204, %v1300
    %v1329 = vmul.f32 %v1205, %v1299
    %v1330 = vmul.f32 %v1206, %v1300
    %v1331 = vmul.f32 %v1207, %v1299
    %v1332 = vmul.f32 %v1208, %v1300
    %v1333 = vmul.f32 %v1209, %v1299
    %v1334 = vmul.f32 %v1210, %v1300
    %v1335 = vadd.f32 %v1303, %v1304
    %1336 = vadd.xlane.f32.xlu0 %v1335
    %v1337 = vpop.xlane.xlu0 %1336
    %v1338 = vadd.f32 %v1305, %v1306
    %1339 = vadd.xlane.f32.xlu0 %v1338
    %v1340 = vpop.xlane.xlu0 %1339
    %v1341 = vadd.f32 %v1307, %v1308
    %1342 = vadd.xlane.f32.xlu0 %v1341
    %v1343 = vpop.xlane.xlu0 %1342
    %v1344 = vadd.f32 %v1309, %v1310
    %1345 = vadd.xlane.f32.xlu0 %v1344
    %v1346 = vpop.xlane.xlu0 %1345
    %v1347 = vadd.f32 %v1311, %v1312
    %1348 = vadd.xlane.f32.xlu0 %v1347
    %v1349 = vpop.xlane.xlu0 %1348
    %v1350 = vadd.f32 %v1313, %v1314
    %1351 = vadd.xlane.f32.xlu0 %v1350
    %v1352 = vpop.xlane.xlu0 %1351
    %v1353 = vadd.f32 %v1315, %v1316
    %1354 = vadd.xlane.f32.xlu0 %v1353
    %v1355 = vpop.xlane.xlu0 %1354
    %v1356 = vadd.f32 %v1317, %v1318
    %1357 = vadd.xlane.f32.xlu0 %v1356
    %v1358 = vpop.xlane.xlu0 %1357
    %v1359 = vadd.f32 %v1319, %v1320
    %1360 = vadd.xlane.f32.xlu0 %v1359
    %v1361 = vpop.xlane.xlu0 %1360
    %v1362 = vadd.f32 %v1321, %v1322
    %1363 = vadd.xlane.f32.xlu0 %v1362
    %v1364 = vpop.xlane.xlu0 %1363
    %v1365 = vadd.f32 %v1323, %v1324
    %1366 = vadd.xlane.f32.xlu0 %v1365
    %v1367 = vpop.xlane.xlu0 %1366
    %v1368 = vadd.f32 %v1325, %v1326
    %1369 = vadd.xlane.f32.xlu0 %v1368
    %v1370 = vpop.xlane.xlu0 %1369
    %v1371 = vadd.f32 %v1327, %v1328
    %1372 = vadd.xlane.f32.xlu0 %v1371
    %v1373 = vpop.xlane.xlu0 %1372
    %v1374 = vadd.f32 %v1329, %v1330
    %1375 = vadd.xlane.f32.xlu0 %v1374
    %v1376 = vpop.xlane.xlu0 %1375
    %v1377 = vadd.f32 %v1331, %v1332
    %1378 = vadd.xlane.f32.xlu0 %v1377
    %v1379 = vpop.xlane.xlu0 %1378
    %v1380 = vadd.f32 %v1333, %v1334
    %1381 = vadd.xlane.f32.xlu0 %v1380
    %v1382 = vpop.xlane.xlu0 %1381
    %v1383 = vld [vmem:[%s9] sm:$0x1]
    %v1385 = vperm.slane %v1383, 0
    %v1387 = vadd.f32 %v1251, %v1385
    %v1388 = vadd.f32 %v1254, %v1385
    %v1389 = vadd.f32 %v1257, %v1385
    %v1390 = vadd.f32 %v1260, %v1385
    %v1391 = vadd.f32 %v1263, %v1385
    %v1392 = vadd.f32 %v1266, %v1385
    %v1393 = vadd.f32 %v1269, %v1385
    %v1394 = vadd.f32 %v1272, %v1385
    %v1395 = vadd.f32 %v1275, %v1385
    %v1396 = vadd.f32 %v1278, %v1385
    %v1397 = vadd.f32 %v1281, %v1385
    %v1398 = vadd.f32 %v1284, %v1385
    %v1399 = vadd.f32 %v1287, %v1385
    %v1400 = vadd.f32 %v1290, %v1385
    %v1401 = vadd.f32 %v1293, %v1385
    %v1402 = vadd.f32 %v1296, %v1385
    %vm1403 = vcmask 7168
    %1404 = vst.msk [vmem:[%s10] sm:$0xff] %vm1403, %v1387
    %1405 = vst.msk [vmem:[%s10 + $0x8] sm:$0xff] %vm1403, %v1388
    %1406 = vst.msk [vmem:[%s10 + $0x10] sm:$0xff] %vm1403, %v1389
    %1407 = vst.msk [vmem:[%s10 + $0x18] sm:$0xff] %vm1403, %v1390
    %1408 = vst.msk [vmem:[%s10 + $0x20] sm:$0xff] %vm1403, %v1391
    %1409 = vst.msk [vmem:[%s10 + $0x28] sm:$0xff] %vm1403, %v1392
    %1410 = vst.msk [vmem:[%s10 + $0x30] sm:$0xff] %vm1403, %v1393
    %1411 = vst.msk [vmem:[%s10 + $0x38] sm:$0xff] %vm1403, %v1394
    %1412 = vst.msk [vmem:[%s10 + $0x40] sm:$0xff] %vm1403, %v1395
    %1413 = vst.msk [vmem:[%s10 + $0x48] sm:$0xff] %vm1403, %v1396
    %1414 = vst.msk [vmem:[%s10 + $0x50] sm:$0xff] %vm1403, %v1397
    %1415 = vst.msk [vmem:[%s10 + $0x58] sm:$0xff] %vm1403, %v1398
    %1416 = vst.msk [vmem:[%s10 + $0x60] sm:$0xff] %vm1403, %v1399
    %1417 = vst.msk [vmem:[%s10 + $0x68] sm:$0xff] %vm1403, %v1400
    %1418 = vst.msk [vmem:[%s10 + $0x70] sm:$0xff] %vm1403, %v1401
    %1419 = vst.msk [vmem:[%s10 + $0x78] sm:$0xff] %vm1403, %v1402
    %v1420 = vld [vmem:[%s9] sm:$0x1]
    %v1422 = vperm.slane %v1420, 0
    %v1424 = vadd.f32 %v1337, %v1422
    %v1425 = vadd.f32 %v1340, %v1422
    %v1426 = vadd.f32 %v1343, %v1422
    %v1427 = vadd.f32 %v1346, %v1422
    %v1428 = vadd.f32 %v1349, %v1422
    %v1429 = vadd.f32 %v1352, %v1422
    %v1430 = vadd.f32 %v1355, %v1422
    %v1431 = vadd.f32 %v1358, %v1422
    %v1432 = vadd.f32 %v1361, %v1422
    %v1433 = vadd.f32 %v1364, %v1422
    %v1434 = vadd.f32 %v1367, %v1422
    %v1435 = vadd.f32 %v1370, %v1422
    %v1436 = vadd.f32 %v1373, %v1422
    %v1437 = vadd.f32 %v1376, %v1422
    %v1438 = vadd.f32 %v1379, %v1422
    %v1439 = vadd.f32 %v1382, %v1422
    %vm1440 = vcmask 15368
    %1441 = vst.msk [vmem:[%s10] sm:$0xff] %vm1440, %v1424
    %1442 = vst.msk [vmem:[%s10 + $0x8] sm:$0xff] %vm1440, %v1425
    %1443 = vst.msk [vmem:[%s10 + $0x10] sm:$0xff] %vm1440, %v1426
    %1444 = vst.msk [vmem:[%s10 + $0x18] sm:$0xff] %vm1440, %v1427
    %1445 = vst.msk [vmem:[%s10 + $0x20] sm:$0xff] %vm1440, %v1428
    %1446 = vst.msk [vmem:[%s10 + $0x28] sm:$0xff] %vm1440, %v1429
    %1447 = vst.msk [vmem:[%s10 + $0x30] sm:$0xff] %vm1440, %v1430
    %1448 = vst.msk [vmem:[%s10 + $0x38] sm:$0xff] %vm1440, %v1431
    %1449 = vst.msk [vmem:[%s10 + $0x40] sm:$0xff] %vm1440, %v1432
    %1450 = vst.msk [vmem:[%s10 + $0x48] sm:$0xff] %vm1440, %v1433
    %1451 = vst.msk [vmem:[%s10 + $0x50] sm:$0xff] %vm1440, %v1434
    %1452 = vst.msk [vmem:[%s10 + $0x58] sm:$0xff] %vm1440, %v1435
    %1453 = vst.msk [vmem:[%s10 + $0x60] sm:$0xff] %vm1440, %v1436
    %1454 = vst.msk [vmem:[%s10 + $0x68] sm:$0xff] %vm1440, %v1437
    %1455 = vst.msk [vmem:[%s10 + $0x70] sm:$0xff] %vm1440, %v1438
    %1456 = vst.msk [vmem:[%s10 + $0x78] sm:$0xff] %vm1440, %v1439
    // Predicated region
    $region50: #{tpu_custom_call.1} parent=1 // pred_check
      _
    $region51: #{tpu_custom_call.1} parent=1 // pred_check_branch
      %1458 = sbr.rel (0) target = $region53
    $region52: #{tpu_custom_call.1} parent=1 // pred_region
      _
    $region53: #{tpu_custom_call.1} parent=1 // pred_fallthru
      _
    // Predicated region
    $region54: #{tpu_custom_call.1} parent=1 // pred_check
      _
    $region55: #{tpu_custom_call.1} parent=1 // pred_check_branch
      %1460 = sbr.rel (0) target = $region57
    $region56: #{tpu_custom_call.1} parent=1 // pred_region
      _
    $region57: #{tpu_custom_call.1} parent=1 // pred_fallthru
      _
    %1461 = vsyncpa [#allocation3], 1
    %1462 = vsyncpa [#allocation5], 1

</llo_original>
